<compile_context>
chip_gen: v5e
topology: v5e:2x2
jax: 0.10.0
libtpu: 0.0.40
codegen_flags: <defaults>
</compile_context>

<pallas_src>
import functools

import jax
import jax.numpy as jnp
from jax.experimental import pallas as pl
from jax.experimental.pallas import tpu as pltpu

# ------------------------- model config (small) -------------------------
HIDDEN = 32
NHEADS = 4
HEAD = HIDDEN // NHEADS
FFN = 4 * HIDDEN
NLAYERS = 2
VOCAB = 64
MAXPOS = 16
LN_EPS = 1e-12
OUT_PAD = 128                      # lane-dense padded width of regressor output

_VMEM = pl.BlockSpec(memory_space=pltpu.MemorySpace.VMEM)


# --------------------------- packed weight layout ------------------------
def _round8(n):
    return (n + 7) // 8 * 8


class _Packer:
    """Assigns 8-row-aligned static row offsets inside one packed buffer."""

    def __init__(self):
        self.off = {}
        self.rows = 0

    def add(self, name, nrows):
        self.off[name] = self.rows
        self.rows += _round8(nrows)


def _layout(batch, seq):
    """Static row offsets of every parameter inside the two packed buffers."""
    p32, p128 = _Packer(), _Packer()          # 32-lane-wide / 128-lane-wide
    p32.add("word_emb", VOCAB)
    p32.add("pos_emb", batch * seq)            # pre-tiled positional rows
    p32.add("emb_ln_g", 1)
    p32.add("emb_ln_b", 1)
    for l in range(NLAYERS):
        for n in ("wq", "wk", "wv", "wo"):
            p32.add(f"{n}{l}", HIDDEN)
        for n in ("bq", "bk", "bv", "bo", "ln1_g", "ln1_b"):
            p32.add(f"{n}{l}", 1)
        p32.add(f"w2{l}", FFN)
        for n in ("b2", "ln2_g", "ln2_b"):
            p32.add(f"{n}{l}", 1)
        p128.add(f"w1{l}", HIDDEN)
        p128.add(f"b1{l}", 1)
    p128.add("w_reg", HIDDEN)
    p128.add("b_reg", 1)
    return p32, p128


# --------------------------- fused Pallas kernel -------------------------
def _fused_forward_kernel(ids_ref, mask_ref, w32_ref, w128_ref, out_ref,
                          *, batch, seq, off32, off128):
    bs = batch * seq
    f32 = jnp.float32
    scale = 1.0 / float(HEAD) ** 0.5

    # Static, 8-row-aligned slices of the packed weight buffers (free views).
    def w32(name, rows):
        r = off32[name]
        return w32_ref[r:r + rows, :]

    def v32(name):
        r = off32[name]
        return w32_ref[r:r + 1, :]

    def w128(name, rows):
        r = off128[name]
        return w128_ref[r:r + rows, :]

    def v128(name):
        r = off128[name]
        return w128_ref[r:r + 1, :]

    def layer_norm(x, g, b):
        # var = E[x^2] - mu^2 -> the two row reductions are independent.
        mu = jnp.mean(x, axis=-1, keepdims=True)
        ms = jnp.mean(x * x, axis=-1, keepdims=True)
        var = ms - mu * mu
        return (x - mu) * jax.lax.rsqrt(var + LN_EPS) * g + b

    # ---- embeddings: one-hot word gather on the MXU + pre-tiled positions ----
    word_oh = (ids_ref[...] ==
               jax.lax.broadcasted_iota(jnp.int32, (bs, VOCAB), 1)).astype(f32)
    emb = jnp.dot(word_oh, w32("word_emb", VOCAB),
                  preferred_element_type=f32)                      # (B*S, H)
    emb = emb + w32("pos_emb", bs)
    h = layer_norm(emb, v32("emb_ln_g"), v32("emb_ln_b"))

    # ---- additive attention bias, hoisted (block-diagonal batch + key mask) ----
    ri = jax.lax.broadcasted_iota(jnp.int32, (bs, bs), 0)
    ci = jax.lax.broadcasted_iota(jnp.int32, (bs, bs), 1)
    keep = mask_ref[...] > 0.5                                     # (1, B*S)
    for b in range(1, batch):                                      # no int div
        m = b * seq
        keep = keep & ((ri >= m) == (ci >= m))
    bias = jnp.where(keep, 0.0, -1e9)                              # (B*S, B*S)

    # ---- constant per-head lane masks, hoisted ----
    lane = jax.lax.broadcasted_iota(jnp.int32, (1, HIDDEN), 1)
    head_masks = [((lane >= hd * HEAD) & (lane < (hd + 1) * HEAD)).astype(f32)
                  for hd in range(NHEADS)]

    for l in range(NLAYERS):                                       # unrolled
        # --- multi-head self-attention (no lane slices, no concats) ---
        q = jnp.dot(h, w32(f"wq{l}", HIDDEN), preferred_element_type=f32) \
            + v32(f"bq{l}")
        k = jnp.dot(h, w32(f"wk{l}", HIDDEN), preferred_element_type=f32) \
            + v32(f"bk{l}")
        v = jnp.dot(h, w32(f"wv{l}", HIDDEN), preferred_element_type=f32) \
            + v32(f"bv{l}")

        ctx = None
        for hm in head_masks:                                      # unrolled
            # scores over the full hidden dim; off-head lanes are zeroed in q.
            s = jax.lax.dot_general(q * hm, k, (((1,), (1,)), ((), ())),
                                    preferred_element_type=f32)    # (B*S, B*S)
            s = s * scale + bias
            s = s - jnp.max(s, axis=-1, keepdims=True)
            p = jnp.exp(s)
            p = p / jnp.sum(p, axis=-1, keepdims=True)             # exact divide
            pv = jnp.dot(p, v * hm, preferred_element_type=f32)    # (B*S, H)
            ctx = pv if ctx is None else ctx + pv                  # head merge

        attn = jnp.dot(ctx, w32(f"wo{l}", HIDDEN),
                       preferred_element_type=f32) + v32(f"bo{l}")
        h = layer_norm(attn + h, v32(f"ln1_g{l}"), v32(f"ln1_b{l}"))

        # --- feed-forward ---
        ff = jnp.dot(h, w128(f"w1{l}", HIDDEN),
                     preferred_element_type=f32) + v128(f"b1{l}")
        # TODO(synk): HF DistilBERT uses erf-GELU; tanh approximation used here.
        ff = jax.nn.gelu(ff, approximate=True)
        ff = jnp.dot(ff, w32(f"w2{l}", FFN),
                     preferred_element_type=f32) + v32(f"b2{l}")
        h = layer_norm(ff + h, v32(f"ln2_g{l}"), v32(f"ln2_b{l}"))

    # --- [CLS] selection via constant one-hot matmul (idle MXU), regressor ---
    i0c = jax.lax.broadcasted_iota(jnp.int32, (batch, bs), 0)
    i1c = jax.lax.broadcasted_iota(jnp.int32, (batch, bs), 1)
    sel = (i1c == i0c * seq).astype(f32)                           # (B, B*S)
    cls = jnp.dot(sel, h, preferred_element_type=f32)              # (B, H)
    # TODO(synk): nn.Dropout(0.3) is identity at inference time; omitted.
    out_ref[...] = (jnp.dot(cls, w128("w_reg", HIDDEN),
                            preferred_element_type=f32)
                    + v128("b_reg"))                               # (B, OUT_PAD)


# --------------------------- parameter init -----------------------------
def _randn(key, shape):
    return jax.random.normal(key, shape, jnp.float32) * 0.02


def init_params(key):
    ks = jax.random.split(key, 9)
    zeros_h = jnp.zeros((NLAYERS, 1, HIDDEN), jnp.float32)
    ones_h = jnp.ones((NLAYERS, 1, HIDDEN), jnp.float32)
    return {
        "word_emb": _randn(ks[0], (VOCAB, HIDDEN)),
        "pos_emb": _randn(ks[1], (MAXPOS, HIDDEN)),
        "emb_ln_g": jnp.ones((1, HIDDEN), jnp.float32),
        "emb_ln_b": jnp.zeros((1, HIDDEN), jnp.float32),
        # weights stored as (in, out) == torch weight.T
        "wq": _randn(ks[2], (NLAYERS, HIDDEN, HIDDEN)),
        "wk": _randn(ks[3], (NLAYERS, HIDDEN, HIDDEN)),
        "wv": _randn(ks[4], (NLAYERS, HIDDEN, HIDDEN)),
        "wo": _randn(ks[5], (NLAYERS, HIDDEN, HIDDEN)),
        "bq": zeros_h, "bk": zeros_h, "bv": zeros_h, "bo": zeros_h,
        "ln1_g": ones_h, "ln1_b": zeros_h,
        "w1": _randn(ks[6], (NLAYERS, HIDDEN, FFN)),
        "b1": jnp.zeros((NLAYERS, 1, FFN), jnp.float32),
        "w2": _randn(ks[7], (NLAYERS, FFN, HIDDEN)),
        "b2": zeros_h,
        "ln2_g": ones_h, "ln2_b": zeros_h,
        "w_reg": _randn(ks[8], (HIDDEN, 1)),
        "b_reg": jnp.zeros((1, 1), jnp.float32),
    }


def pack_params(params, batch, seq):
    """Packs all weights into two contiguous f32 buffers (done once)."""
    p32, p128 = _layout(batch, seq)
    buf32 = jnp.zeros((p32.rows, HIDDEN), jnp.float32)
    buf128 = jnp.zeros((p128.rows, OUT_PAD), jnp.float32)

    def put(buf, off, name, val):
        r = off[name]
        return buf.at[r:r + val.shape[0], :val.shape[1]].set(val)

    buf32 = put(buf32, p32.off, "word_emb", params["word_emb"])
    buf32 = put(buf32, p32.off, "pos_emb",
                jnp.tile(params["pos_emb"][:seq], (batch, 1)))
    buf32 = put(buf32, p32.off, "emb_ln_g", params["emb_ln_g"])
    buf32 = put(buf32, p32.off, "emb_ln_b", params["emb_ln_b"])
    for l in range(NLAYERS):
        for n in ("wq", "wk", "wv", "wo", "bq", "bk", "bv", "bo",
                  "ln1_g", "ln1_b", "w2", "b2", "ln2_g", "ln2_b"):
            buf32 = put(buf32, p32.off, f"{n}{l}", params[n][l])
        buf128 = put(buf128, p128.off, f"w1{l}", params["w1"][l])
        buf128 = put(buf128, p128.off, f"b1{l}", params["b1"][l])
    buf128 = put(buf128, p128.off, "w_reg", params["w_reg"])
    buf128 = put(buf128, p128.off, "b_reg", params["b_reg"])
    return buf32, buf128


# ----------------------------- forward pass -----------------------------
def make_forward(batch, seq):
    """Builds forward(packed32, packed128, input_ids, attention_mask) -> (B,)."""
    p32, p128 = _layout(batch, seq)
    kernel = functools.partial(_fused_forward_kernel, batch=batch, seq=seq,
                               off32=p32.off, off128=p128.off)

    @jax.jit
    def forward(packed32, packed128, input_ids, attention_mask):
        ids = input_ids.reshape(batch * seq, 1).astype(jnp.int32)
        mask = attention_mask.reshape(1, batch * seq).astype(jnp.float32)
        out = pl.pallas_call(
            kernel,
            out_shape=jax.ShapeDtypeStruct((batch, OUT_PAD), jnp.float32),
            in_specs=[_VMEM] * 4,
            out_specs=_VMEM,
        )(ids, mask, packed32, packed128)
        return out[:, 0]                                           # (B,)

    return forward


# --------------------------------- main ----------------------------------
if __name__ == "__main__":
    B, S = 2, 8
    root = jax.random.PRNGKey(0)
    k_param, k_ids = jax.random.split(root)

    params = init_params(k_param)
    packed32, packed128 = pack_params(params, B, S)

    input_ids = jax.random.randint(k_ids, (B, S), 0, VOCAB, dtype=jnp.int32)
    # First sequence fully valid, second has its last 2 tokens masked out.
    valid_lens = jnp.array([[S], [S - 2]], dtype=jnp.int32)
    attention_mask = (jnp.arange(S)[None, :] < valid_lens).astype(jnp.int32)

    fwd = make_forward(B, S)
    y = fwd(packed32, packed128, input_ids, attention_mask)
    jax.block_until_ready(y)

    assert y.shape == (B,), f"unexpected output shape {y.shape}"
    print("KERNEL_OK")
</pallas_src>

<mosaic_0001>
module attributes {stable_mosaic.version = 11 : i64} {
  func.func @_fused_forward_kernel(%arg0: memref<16x1xi32, #tpu.memory_space<vmem>>, %arg1: memref<1x16xf32, #tpu.memory_space<vmem>>, %arg2: memref<752x32xf32, #tpu.memory_space<vmem>>, %arg3: memref<120x128xf32, #tpu.memory_space<vmem>>, %arg4: memref<2x128xf32, #tpu.memory_space<vmem>>) attributes {dimension_semantics = [], scalar_prefetch = 0 : i64, scratch_operands = 0 : i64, tpu.core_type = #tpu.core_type<tc>} {
    %c0 = arith.constant 0 : index
    %c0_0 = arith.constant 0 : index
    %0 = vector.load %arg0[%c0, %c0_0] : memref<16x1xi32, #tpu.memory_space<vmem>>, vector<16x1xi32>
    %1 = tpu.iota {dimensions = array<i32: 1>} : vector<16x64xi32>
    %2 = vector.broadcast %0 : vector<16x1xi32> to vector<16x64xi32>
    %3 = arith.cmpi eq, %2, %1 : vector<16x64xi32>
    %4 = arith.extui %3 : vector<16x64xi1> to vector<16x64xi32>
    %5 = arith.sitofp %4 : vector<16x64xi32> to vector<16x64xf32>
    %c0_1 = arith.constant 0 : index
    %c0_2 = arith.constant 0 : index
    %6 = vector.load %arg2[%c0_1, %c0_2] : memref<752x32xf32, #tpu.memory_space<vmem>>, vector<64x32xf32>
    %cst = arith.constant dense<0.000000e+00> : vector<16x32xf32>
    %7 = tpu.matmul %5, %6, %cst {dimension_numbers = #tpu.dot_dimension_numbers<[1], [0], [0], [1], [0, 0, 1, 1], [], []>} : vector<16x64xf32>, vector<64x32xf32>, vector<16x32xf32> -> vector<16x32xf32>
    %c64 = arith.constant 64 : index
    %c0_3 = arith.constant 0 : index
    %8 = vector.load %arg2[%c64, %c0_3] : memref<752x32xf32, #tpu.memory_space<vmem>>, vector<16x32xf32>
    %9 = arith.addf %7, %8 : vector<16x32xf32>
    %c80 = arith.constant 80 : index
    %c0_4 = arith.constant 0 : index
    %10 = vector.load %arg2[%c80, %c0_4] : memref<752x32xf32, #tpu.memory_space<vmem>>, vector<1x32xf32>
    %c88 = arith.constant 88 : index
    %c0_5 = arith.constant 0 : index
    %11 = vector.load %arg2[%c88, %c0_5] : memref<752x32xf32, #tpu.memory_space<vmem>>, vector<1x32xf32>
    %cst_6 = arith.constant dense<0.000000e+00> : vector<16xf32>
    %12 = vector.multi_reduction <add>, %9, %cst_6 [1] : vector<16x32xf32> to vector<16xf32>
    %13 = vector.shape_cast %12 : vector<16xf32> to vector<16x1xf32>
    %cst_7 = arith.constant 3.200000e+01 : f32
    %14 = vector.broadcast %cst_7 : f32 to vector<16x1xf32>
    %15 = arith.divf %13, %14 : vector<16x1xf32>
    %16 = arith.mulf %9, %9 : vector<16x32xf32>
    %cst_8 = arith.constant dense<0.000000e+00> : vector<16xf32>
    %17 = vector.multi_reduction <add>, %16, %cst_8 [1] : vector<16x32xf32> to vector<16xf32>
    %18 = vector.shape_cast %17 : vector<16xf32> to vector<16x1xf32>
    %cst_9 = arith.constant 3.200000e+01 : f32
    %19 = vector.broadcast %cst_9 : f32 to vector<16x1xf32>
    %20 = arith.divf %18, %19 : vector<16x1xf32>
    %21 = arith.mulf %15, %15 : vector<16x1xf32>
    %22 = arith.subf %20, %21 : vector<16x1xf32>
    %23 = vector.broadcast %15 : vector<16x1xf32> to vector<16x32xf32>
    %24 = arith.subf %9, %23 : vector<16x32xf32>
    %cst_10 = arith.constant 9.99999996E-13 : f32
    %25 = vector.broadcast %cst_10 : f32 to vector<16x1xf32>
    %26 = arith.addf %22, %25 : vector<16x1xf32>
    %27 = math.rsqrt %26 : vector<16x1xf32>
    %28 = vector.broadcast %27 : vector<16x1xf32> to vector<16x32xf32>
    %29 = arith.mulf %24, %28 : vector<16x32xf32>
    %30 = vector.broadcast %10 : vector<1x32xf32> to vector<16x32xf32>
    %31 = arith.mulf %29, %30 : vector<16x32xf32>
    %32 = vector.broadcast %11 : vector<1x32xf32> to vector<16x32xf32>
    %33 = arith.addf %31, %32 : vector<16x32xf32>
    %34 = tpu.iota {dimensions = array<i32: 0>} : vector<16x16xi32>
    %35 = tpu.iota {dimensions = array<i32: 1>} : vector<16x16xi32>
    %c0_11 = arith.constant 0 : index
    %c0_12 = arith.constant 0 : index
    %36 = vector.load %arg1[%c0_11, %c0_12] : memref<1x16xf32, #tpu.memory_space<vmem>>, vector<1x16xf32>
    %cst_13 = arith.constant 5.000000e-01 : f32
    %37 = vector.broadcast %cst_13 : f32 to vector<1x16xf32>
    %38 = arith.cmpf ogt, %36, %37 : vector<1x16xf32>
    %c8_i32 = arith.constant 8 : i32
    %39 = vector.broadcast %c8_i32 : i32 to vector<16x16xi32>
    %40 = arith.cmpi sge, %34, %39 : vector<16x16xi32>
    %c8_i32_14 = arith.constant 8 : i32
    %41 = vector.broadcast %c8_i32_14 : i32 to vector<16x16xi32>
    %42 = arith.cmpi sge, %35, %41 : vector<16x16xi32>
    %43 = arith.xori %40, %42 : vector<16x16xi1>
    %cst_15 = arith.constant dense<true> : vector<16x16xi1>
    %44 = arith.xori %43, %cst_15 : vector<16x16xi1>
    %45 = vector.broadcast %38 : vector<1x16xi1> to vector<16x16xi1>
    %46 = arith.andi %45, %44 : vector<16x16xi1>
    %cst_16 = arith.constant 0.000000e+00 : f32
    %cst_17 = arith.constant -1.000000e+09 : f32
    %47 = vector.broadcast %cst_16 : f32 to vector<16x16xf32>
    %48 = vector.broadcast %cst_17 : f32 to vector<16x16xf32>
    %49 = arith.select %46, %47, %48 : vector<16x16xi1>, vector<16x16xf32>
    %50 = tpu.iota {dimensions = array<i32: 1>} : vector<1x32xi32>
    %c0_i32 = arith.constant 0 : i32
    %51 = vector.broadcast %c0_i32 : i32 to vector<1x32xi32>
    %52 = arith.cmpi sge, %50, %51 : vector<1x32xi32>
    %c8_i32_18 = arith.constant 8 : i32
    %53 = vector.broadcast %c8_i32_18 : i32 to vector<1x32xi32>
    %54 = arith.cmpi slt, %50, %53 : vector<1x32xi32>
    %55 = arith.andi %52, %54 : vector<1x32xi1>
    %56 = arith.extui %55 : vector<1x32xi1> to vector<1x32xi32>
    %57 = arith.sitofp %56 : vector<1x32xi32> to vector<1x32xf32>
    %c8_i32_19 = arith.constant 8 : i32
    %58 = vector.broadcast %c8_i32_19 : i32 to vector<1x32xi32>
    %59 = arith.cmpi sge, %50, %58 : vector<1x32xi32>
    %c16_i32 = arith.constant 16 : i32
    %60 = vector.broadcast %c16_i32 : i32 to vector<1x32xi32>
    %61 = arith.cmpi slt, %50, %60 : vector<1x32xi32>
    %62 = arith.andi %59, %61 : vector<1x32xi1>
    %63 = arith.extui %62 : vector<1x32xi1> to vector<1x32xi32>
    %64 = arith.sitofp %63 : vector<1x32xi32> to vector<1x32xf32>
    %c16_i32_20 = arith.constant 16 : i32
    %65 = vector.broadcast %c16_i32_20 : i32 to vector<1x32xi32>
    %66 = arith.cmpi sge, %50, %65 : vector<1x32xi32>
    %c24_i32 = arith.constant 24 : i32
    %67 = vector.broadcast %c24_i32 : i32 to vector<1x32xi32>
    %68 = arith.cmpi slt, %50, %67 : vector<1x32xi32>
    %69 = arith.andi %66, %68 : vector<1x32xi1>
    %70 = arith.extui %69 : vector<1x32xi1> to vector<1x32xi32>
    %71 = arith.sitofp %70 : vector<1x32xi32> to vector<1x32xf32>
    %c24_i32_21 = arith.constant 24 : i32
    %72 = vector.broadcast %c24_i32_21 : i32 to vector<1x32xi32>
    %73 = arith.cmpi sge, %50, %72 : vector<1x32xi32>
    %c32_i32 = arith.constant 32 : i32
    %74 = vector.broadcast %c32_i32 : i32 to vector<1x32xi32>
    %75 = arith.cmpi slt, %50, %74 : vector<1x32xi32>
    %76 = arith.andi %73, %75 : vector<1x32xi1>
    %77 = arith.extui %76 : vector<1x32xi1> to vector<1x32xi32>
    %78 = arith.sitofp %77 : vector<1x32xi32> to vector<1x32xf32>
    %c96 = arith.constant 96 : index
    %c0_22 = arith.constant 0 : index
    %79 = vector.load %arg2[%c96, %c0_22] : memref<752x32xf32, #tpu.memory_space<vmem>>, vector<32x32xf32>
    %cst_23 = arith.constant dense<0.000000e+00> : vector<16x32xf32>
    %80 = tpu.matmul %33, %79, %cst_23 {dimension_numbers = #tpu.dot_dimension_numbers<[1], [0], [0], [1], [0, 0, 1, 1], [], []>} : vector<16x32xf32>, vector<32x32xf32>, vector<16x32xf32> -> vector<16x32xf32>
    %c224 = arith.constant 224 : index
    %c0_24 = arith.constant 0 : index
    %81 = vector.load %arg2[%c224, %c0_24] : memref<752x32xf32, #tpu.memory_space<vmem>>, vector<1x32xf32>
    %82 = vector.broadcast %81 : vector<1x32xf32> to vector<16x32xf32>
    %83 = arith.addf %80, %82 : vector<16x32xf32>
    %c128 = arith.constant 128 : index
    %c0_25 = arith.constant 0 : index
    %84 = vector.load %arg2[%c128, %c0_25] : memref<752x32xf32, #tpu.memory_space<vmem>>, vector<32x32xf32>
    %cst_26 = arith.constant dense<0.000000e+00> : vector<16x32xf32>
    %85 = tpu.matmul %33, %84, %cst_26 {dimension_numbers = #tpu.dot_dimension_numbers<[1], [0], [0], [1], [0, 0, 1, 1], [], []>} : vector<16x32xf32>, vector<32x32xf32>, vector<16x32xf32> -> vector<16x32xf32>
    %c232 = arith.constant 232 : index
    %c0_27 = arith.constant 0 : index
    %86 = vector.load %arg2[%c232, %c0_27] : memref<752x32xf32, #tpu.memory_space<vmem>>, vector<1x32xf32>
    %87 = vector.broadcast %86 : vector<1x32xf32> to vector<16x32xf32>
    %88 = arith.addf %85, %87 : vector<16x32xf32>
    %c160 = arith.constant 160 : index
    %c0_28 = arith.constant 0 : index
    %89 = vector.load %arg2[%c160, %c0_28] : memref<752x32xf32, #tpu.memory_space<vmem>>, vector<32x32xf32>
    %cst_29 = arith.constant dense<0.000000e+00> : vector<16x32xf32>
    %90 = tpu.matmul %33, %89, %cst_29 {dimension_numbers = #tpu.dot_dimension_numbers<[1], [0], [0], [1], [0, 0, 1, 1], [], []>} : vector<16x32xf32>, vector<32x32xf32>, vector<16x32xf32> -> vector<16x32xf32>
    %c240 = arith.constant 240 : index
    %c0_30 = arith.constant 0 : index
    %91 = vector.load %arg2[%c240, %c0_30] : memref<752x32xf32, #tpu.memory_space<vmem>>, vector<1x32xf32>
    %92 = vector.broadcast %91 : vector<1x32xf32> to vector<16x32xf32>
    %93 = arith.addf %90, %92 : vector<16x32xf32>
    %94 = vector.broadcast %57 : vector<1x32xf32> to vector<16x32xf32>
    %95 = arith.mulf %83, %94 : vector<16x32xf32>
    %cst_31 = arith.constant dense<0.000000e+00> : vector<16x16xf32>
    %96 = tpu.matmul %95, %88, %cst_31 {dimension_numbers = #tpu.dot_dimension_numbers<[1], [1], [0], [0], [0, 0, 1, 0], [], []>} : vector<16x32xf32>, vector<16x32xf32>, vector<16x16xf32> -> vector<16x16xf32>
    %cst_32 = arith.constant 0.353553385 : f32
    %97 = vector.broadcast %cst_32 : f32 to vector<16x16xf32>
    %98 = arith.mulf %96, %97 : vector<16x16xf32>
    %99 = arith.addf %98, %49 : vector<16x16xf32>
    %cst_33 = arith.constant dense<0xFF800000> : vector<16xf32>
    %100 = vector.multi_reduction <maximumf>, %99, %cst_33 [1] : vector<16x16xf32> to vector<16xf32>
    %101 = vector.shape_cast %100 : vector<16xf32> to vector<16x1xf32>
    %102 = vector.broadcast %101 : vector<16x1xf32> to vector<16x16xf32>
    %103 = arith.subf %99, %102 : vector<16x16xf32>
    %104 = math.exp %103 : vector<16x16xf32>
    %cst_34 = arith.constant dense<0.000000e+00> : vector<16xf32>
    %105 = vector.multi_reduction <add>, %104, %cst_34 [1] : vector<16x16xf32> to vector<16xf32>
    %106 = vector.shape_cast %105 : vector<16xf32> to vector<16x1xf32>
    %107 = vector.broadcast %106 : vector<16x1xf32> to vector<16x16xf32>
    %108 = arith.divf %104, %107 : vector<16x16xf32>
    %109 = vector.broadcast %57 : vector<1x32xf32> to vector<16x32xf32>
    %110 = arith.mulf %93, %109 : vector<16x32xf32>
    %cst_35 = arith.constant dense<0.000000e+00> : vector<16x32xf32>
    %111 = tpu.matmul %108, %110, %cst_35 {dimension_numbers = #tpu.dot_dimension_numbers<[1], [0], [0], [1], [0, 0, 1, 1], [], []>} : vector<16x16xf32>, vector<16x32xf32>, vector<16x32xf32> -> vector<16x32xf32>
    %112 = vector.broadcast %64 : vector<1x32xf32> to vector<16x32xf32>
    %113 = arith.mulf %83, %112 : vector<16x32xf32>
    %cst_36 = arith.constant dense<0.000000e+00> : vector<16x16xf32>
    %114 = tpu.matmul %113, %88, %cst_36 {dimension_numbers = #tpu.dot_dimension_numbers<[1], [1], [0], [0], [0, 0, 1, 0], [], []>} : vector<16x32xf32>, vector<16x32xf32>, vector<16x16xf32> -> vector<16x16xf32>
    %cst_37 = arith.constant 0.353553385 : f32
    %115 = vector.broadcast %cst_37 : f32 to vector<16x16xf32>
    %116 = arith.mulf %114, %115 : vector<16x16xf32>
    %117 = arith.addf %116, %49 : vector<16x16xf32>
    %cst_38 = arith.constant dense<0xFF800000> : vector<16xf32>
    %118 = vector.multi_reduction <maximumf>, %117, %cst_38 [1] : vector<16x16xf32> to vector<16xf32>
    %119 = vector.shape_cast %118 : vector<16xf32> to vector<16x1xf32>
    %120 = vector.broadcast %119 : vector<16x1xf32> to vector<16x16xf32>
    %121 = arith.subf %117, %120 : vector<16x16xf32>
    %122 = math.exp %121 : vector<16x16xf32>
    %cst_39 = arith.constant dense<0.000000e+00> : vector<16xf32>
    %123 = vector.multi_reduction <add>, %122, %cst_39 [1] : vector<16x16xf32> to vector<16xf32>
    %124 = vector.shape_cast %123 : vector<16xf32> to vector<16x1xf32>
    %125 = vector.broadcast %124 : vector<16x1xf32> to vector<16x16xf32>
    %126 = arith.divf %122, %125 : vector<16x16xf32>
    %127 = vector.broadcast %64 : vector<1x32xf32> to vector<16x32xf32>
    %128 = arith.mulf %93, %127 : vector<16x32xf32>
    %cst_40 = arith.constant dense<0.000000e+00> : vector<16x32xf32>
    %129 = tpu.matmul %126, %128, %cst_40 {dimension_numbers = #tpu.dot_dimension_numbers<[1], [0], [0], [1], [0, 0, 1, 1], [], []>} : vector<16x16xf32>, vector<16x32xf32>, vector<16x32xf32> -> vector<16x32xf32>
    %130 = arith.addf %111, %129 : vector<16x32xf32>
    %131 = vector.broadcast %71 : vector<1x32xf32> to vector<16x32xf32>
    %132 = arith.mulf %83, %131 : vector<16x32xf32>
    %cst_41 = arith.constant dense<0.000000e+00> : vector<16x16xf32>
    %133 = tpu.matmul %132, %88, %cst_41 {dimension_numbers = #tpu.dot_dimension_numbers<[1], [1], [0], [0], [0, 0, 1, 0], [], []>} : vector<16x32xf32>, vector<16x32xf32>, vector<16x16xf32> -> vector<16x16xf32>
    %cst_42 = arith.constant 0.353553385 : f32
    %134 = vector.broadcast %cst_42 : f32 to vector<16x16xf32>
    %135 = arith.mulf %133, %134 : vector<16x16xf32>
    %136 = arith.addf %135, %49 : vector<16x16xf32>
    %cst_43 = arith.constant dense<0xFF800000> : vector<16xf32>
    %137 = vector.multi_reduction <maximumf>, %136, %cst_43 [1] : vector<16x16xf32> to vector<16xf32>
    %138 = vector.shape_cast %137 : vector<16xf32> to vector<16x1xf32>
    %139 = vector.broadcast %138 : vector<16x1xf32> to vector<16x16xf32>
    %140 = arith.subf %136, %139 : vector<16x16xf32>
    %141 = math.exp %140 : vector<16x16xf32>
    %cst_44 = arith.constant dense<0.000000e+00> : vector<16xf32>
    %142 = vector.multi_reduction <add>, %141, %cst_44 [1] : vector<16x16xf32> to vector<16xf32>
    %143 = vector.shape_cast %142 : vector<16xf32> to vector<16x1xf32>
    %144 = vector.broadcast %143 : vector<16x1xf32> to vector<16x16xf32>
    %145 = arith.divf %141, %144 : vector<16x16xf32>
    %146 = vector.broadcast %71 : vector<1x32xf32> to vector<16x32xf32>
    %147 = arith.mulf %93, %146 : vector<16x32xf32>
    %cst_45 = arith.constant dense<0.000000e+00> : vector<16x32xf32>
    %148 = tpu.matmul %145, %147, %cst_45 {dimension_numbers = #tpu.dot_dimension_numbers<[1], [0], [0], [1], [0, 0, 1, 1], [], []>} : vector<16x16xf32>, vector<16x32xf32>, vector<16x32xf32> -> vector<16x32xf32>
    %149 = arith.addf %130, %148 : vector<16x32xf32>
    %150 = vector.broadcast %78 : vector<1x32xf32> to vector<16x32xf32>
    %151 = arith.mulf %83, %150 : vector<16x32xf32>
    %cst_46 = arith.constant dense<0.000000e+00> : vector<16x16xf32>
    %152 = tpu.matmul %151, %88, %cst_46 {dimension_numbers = #tpu.dot_dimension_numbers<[1], [1], [0], [0], [0, 0, 1, 0], [], []>} : vector<16x32xf32>, vector<16x32xf32>, vector<16x16xf32> -> vector<16x16xf32>
    %cst_47 = arith.constant 0.353553385 : f32
    %153 = vector.broadcast %cst_47 : f32 to vector<16x16xf32>
    %154 = arith.mulf %152, %153 : vector<16x16xf32>
    %155 = arith.addf %154, %49 : vector<16x16xf32>
    %cst_48 = arith.constant dense<0xFF800000> : vector<16xf32>
    %156 = vector.multi_reduction <maximumf>, %155, %cst_48 [1] : vector<16x16xf32> to vector<16xf32>
    %157 = vector.shape_cast %156 : vector<16xf32> to vector<16x1xf32>
    %158 = vector.broadcast %157 : vector<16x1xf32> to vector<16x16xf32>
    %159 = arith.subf %155, %158 : vector<16x16xf32>
    %160 = math.exp %159 : vector<16x16xf32>
    %cst_49 = arith.constant dense<0.000000e+00> : vector<16xf32>
    %161 = vector.multi_reduction <add>, %160, %cst_49 [1] : vector<16x16xf32> to vector<16xf32>
    %162 = vector.shape_cast %161 : vector<16xf32> to vector<16x1xf32>
    %163 = vector.broadcast %162 : vector<16x1xf32> to vector<16x16xf32>
    %164 = arith.divf %160, %163 : vector<16x16xf32>
    %165 = vector.broadcast %78 : vector<1x32xf32> to vector<16x32xf32>
    %166 = arith.mulf %93, %165 : vector<16x32xf32>
    %cst_50 = arith.constant dense<0.000000e+00> : vector<16x32xf32>
    %167 = tpu.matmul %164, %166, %cst_50 {dimension_numbers = #tpu.dot_dimension_numbers<[1], [0], [0], [1], [0, 0, 1, 1], [], []>} : vector<16x16xf32>, vector<16x32xf32>, vector<16x32xf32> -> vector<16x32xf32>
    %168 = arith.addf %149, %167 : vector<16x32xf32>
    %c192 = arith.constant 192 : index
    %c0_51 = arith.constant 0 : index
    %169 = vector.load %arg2[%c192, %c0_51] : memref<752x32xf32, #tpu.memory_space<vmem>>, vector<32x32xf32>
    %cst_52 = arith.constant dense<0.000000e+00> : vector<16x32xf32>
    %170 = tpu.matmul %168, %169, %cst_52 {dimension_numbers = #tpu.dot_dimension_numbers<[1], [0], [0], [1], [0, 0, 1, 1], [], []>} : vector<16x32xf32>, vector<32x32xf32>, vector<16x32xf32> -> vector<16x32xf32>
    %c248 = arith.constant 248 : index
    %c0_53 = arith.constant 0 : index
    %171 = vector.load %arg2[%c248, %c0_53] : memref<752x32xf32, #tpu.memory_space<vmem>>, vector<1x32xf32>
    %172 = vector.broadcast %171 : vector<1x32xf32> to vector<16x32xf32>
    %173 = arith.addf %170, %172 : vector<16x32xf32>
    %174 = arith.addf %173, %33 : vector<16x32xf32>
    %c256 = arith.constant 256 : index
    %c0_54 = arith.constant 0 : index
    %175 = vector.load %arg2[%c256, %c0_54] : memref<752x32xf32, #tpu.memory_space<vmem>>, vector<1x32xf32>
    %c264 = arith.constant 264 : index
    %c0_55 = arith.constant 0 : index
    %176 = vector.load %arg2[%c264, %c0_55] : memref<752x32xf32, #tpu.memory_space<vmem>>, vector<1x32xf32>
    %cst_56 = arith.constant dense<0.000000e+00> : vector<16xf32>
    %177 = vector.multi_reduction <add>, %174, %cst_56 [1] : vector<16x32xf32> to vector<16xf32>
    %178 = vector.shape_cast %177 : vector<16xf32> to vector<16x1xf32>
    %cst_57 = arith.constant 3.200000e+01 : f32
    %179 = vector.broadcast %cst_57 : f32 to vector<16x1xf32>
    %180 = arith.divf %178, %179 : vector<16x1xf32>
    %181 = arith.mulf %174, %174 : vector<16x32xf32>
    %cst_58 = arith.constant dense<0.000000e+00> : vector<16xf32>
    %182 = vector.multi_reduction <add>, %181, %cst_58 [1] : vector<16x32xf32> to vector<16xf32>
    %183 = vector.shape_cast %182 : vector<16xf32> to vector<16x1xf32>
    %cst_59 = arith.constant 3.200000e+01 : f32
    %184 = vector.broadcast %cst_59 : f32 to vector<16x1xf32>
    %185 = arith.divf %183, %184 : vector<16x1xf32>
    %186 = arith.mulf %180, %180 : vector<16x1xf32>
    %187 = arith.subf %185, %186 : vector<16x1xf32>
    %188 = vector.broadcast %180 : vector<16x1xf32> to vector<16x32xf32>
    %189 = arith.subf %174, %188 : vector<16x32xf32>
    %cst_60 = arith.constant 9.99999996E-13 : f32
    %190 = vector.broadcast %cst_60 : f32 to vector<16x1xf32>
    %191 = arith.addf %187, %190 : vector<16x1xf32>
    %192 = math.rsqrt %191 : vector<16x1xf32>
    %193 = vector.broadcast %192 : vector<16x1xf32> to vector<16x32xf32>
    %194 = arith.mulf %189, %193 : vector<16x32xf32>
    %195 = vector.broadcast %175 : vector<1x32xf32> to vector<16x32xf32>
    %196 = arith.mulf %194, %195 : vector<16x32xf32>
    %197 = vector.broadcast %176 : vector<1x32xf32> to vector<16x32xf32>
    %198 = arith.addf %196, %197 : vector<16x32xf32>
    %c0_61 = arith.constant 0 : index
    %c0_62 = arith.constant 0 : index
    %199 = vector.load %arg3[%c0_61, %c0_62] : memref<120x128xf32, #tpu.memory_space<vmem>>, vector<32x128xf32>
    %cst_63 = arith.constant dense<0.000000e+00> : vector<16x128xf32>
    %200 = tpu.matmul %198, %199, %cst_63 {dimension_numbers = #tpu.dot_dimension_numbers<[1], [0], [0], [1], [0, 0, 1, 1], [], []>} : vector<16x32xf32>, vector<32x128xf32>, vector<16x128xf32> -> vector<16x128xf32>
    %c32 = arith.constant 32 : index
    %c0_64 = arith.constant 0 : index
    %201 = vector.load %arg3[%c32, %c0_64] : memref<120x128xf32, #tpu.memory_space<vmem>>, vector<1x128xf32>
    %202 = vector.broadcast %201 : vector<1x128xf32> to vector<16x128xf32>
    %203 = arith.addf %200, %202 : vector<16x128xf32>
    %204 = arith.mulf %203, %203 : vector<16x128xf32>
    %205 = arith.mulf %203, %204 : vector<16x128xf32>
    %cst_65 = arith.constant 4.471500e-02 : f32
    %206 = vector.broadcast %cst_65 : f32 to vector<16x128xf32>
    %207 = arith.mulf %206, %205 : vector<16x128xf32>
    %208 = arith.addf %203, %207 : vector<16x128xf32>
    %cst_66 = arith.constant 0.797884583 : f32
    %209 = vector.broadcast %cst_66 : f32 to vector<16x128xf32>
    %210 = arith.mulf %209, %208 : vector<16x128xf32>
    %211 = math.tanh %210 : vector<16x128xf32>
    %cst_67 = arith.constant 1.000000e+00 : f32
    %212 = vector.broadcast %cst_67 : f32 to vector<16x128xf32>
    %213 = arith.addf %212, %211 : vector<16x128xf32>
    %cst_68 = arith.constant 5.000000e-01 : f32
    %214 = vector.broadcast %cst_68 : f32 to vector<16x128xf32>
    %215 = arith.mulf %214, %213 : vector<16x128xf32>
    %216 = arith.mulf %203, %215 : vector<16x128xf32>
    %c272 = arith.constant 272 : index
    %c0_69 = arith.constant 0 : index
    %217 = vector.load %arg2[%c272, %c0_69] : memref<752x32xf32, #tpu.memory_space<vmem>>, vector<128x32xf32>
    %cst_70 = arith.constant dense<0.000000e+00> : vector<16x32xf32>
    %218 = tpu.matmul %216, %217, %cst_70 {dimension_numbers = #tpu.dot_dimension_numbers<[1], [0], [0], [1], [0, 0, 1, 1], [], []>} : vector<16x128xf32>, vector<128x32xf32>, vector<16x32xf32> -> vector<16x32xf32>
    %c400 = arith.constant 400 : index
    %c0_71 = arith.constant 0 : index
    %219 = vector.load %arg2[%c400, %c0_71] : memref<752x32xf32, #tpu.memory_space<vmem>>, vector<1x32xf32>
    %220 = vector.broadcast %219 : vector<1x32xf32> to vector<16x32xf32>
    %221 = arith.addf %218, %220 : vector<16x32xf32>
    %222 = arith.addf %221, %198 : vector<16x32xf32>
    %c408 = arith.constant 408 : index
    %c0_72 = arith.constant 0 : index
    %223 = vector.load %arg2[%c408, %c0_72] : memref<752x32xf32, #tpu.memory_space<vmem>>, vector<1x32xf32>
    %c416 = arith.constant 416 : index
    %c0_73 = arith.constant 0 : index
    %224 = vector.load %arg2[%c416, %c0_73] : memref<752x32xf32, #tpu.memory_space<vmem>>, vector<1x32xf32>
    %cst_74 = arith.constant dense<0.000000e+00> : vector<16xf32>
    %225 = vector.multi_reduction <add>, %222, %cst_74 [1] : vector<16x32xf32> to vector<16xf32>
    %226 = vector.shape_cast %225 : vector<16xf32> to vector<16x1xf32>
    %cst_75 = arith.constant 3.200000e+01 : f32
    %227 = vector.broadcast %cst_75 : f32 to vector<16x1xf32>
    %228 = arith.divf %226, %227 : vector<16x1xf32>
    %229 = arith.mulf %222, %222 : vector<16x32xf32>
    %cst_76 = arith.constant dense<0.000000e+00> : vector<16xf32>
    %230 = vector.multi_reduction <add>, %229, %cst_76 [1] : vector<16x32xf32> to vector<16xf32>
    %231 = vector.shape_cast %230 : vector<16xf32> to vector<16x1xf32>
    %cst_77 = arith.constant 3.200000e+01 : f32
    %232 = vector.broadcast %cst_77 : f32 to vector<16x1xf32>
    %233 = arith.divf %231, %232 : vector<16x1xf32>
    %234 = arith.mulf %228, %228 : vector<16x1xf32>
    %235 = arith.subf %233, %234 : vector<16x1xf32>
    %236 = vector.broadcast %228 : vector<16x1xf32> to vector<16x32xf32>
    %237 = arith.subf %222, %236 : vector<16x32xf32>
    %cst_78 = arith.constant 9.99999996E-13 : f32
    %238 = vector.broadcast %cst_78 : f32 to vector<16x1xf32>
    %239 = arith.addf %235, %238 : vector<16x1xf32>
    %240 = math.rsqrt %239 : vector<16x1xf32>
    %241 = vector.broadcast %240 : vector<16x1xf32> to vector<16x32xf32>
    %242 = arith.mulf %237, %241 : vector<16x32xf32>
    %243 = vector.broadcast %223 : vector<1x32xf32> to vector<16x32xf32>
    %244 = arith.mulf %242, %243 : vector<16x32xf32>
    %245 = vector.broadcast %224 : vector<1x32xf32> to vector<16x32xf32>
    %246 = arith.addf %244, %245 : vector<16x32xf32>
    %c424 = arith.constant 424 : index
    %c0_79 = arith.constant 0 : index
    %247 = vector.load %arg2[%c424, %c0_79] : memref<752x32xf32, #tpu.memory_space<vmem>>, vector<32x32xf32>
    %cst_80 = arith.constant dense<0.000000e+00> : vector<16x32xf32>
    %248 = tpu.matmul %246, %247, %cst_80 {dimension_numbers = #tpu.dot_dimension_numbers<[1], [0], [0], [1], [0, 0, 1, 1], [], []>} : vector<16x32xf32>, vector<32x32xf32>, vector<16x32xf32> -> vector<16x32xf32>
    %c552 = arith.constant 552 : index
    %c0_81 = arith.constant 0 : index
    %249 = vector.load %arg2[%c552, %c0_81] : memref<752x32xf32, #tpu.memory_space<vmem>>, vector<1x32xf32>
    %250 = vector.broadcast %249 : vector<1x32xf32> to vector<16x32xf32>
    %251 = arith.addf %248, %250 : vector<16x32xf32>
    %c456 = arith.constant 456 : index
    %c0_82 = arith.constant 0 : index
    %252 = vector.load %arg2[%c456, %c0_82] : memref<752x32xf32, #tpu.memory_space<vmem>>, vector<32x32xf32>
    %cst_83 = arith.constant dense<0.000000e+00> : vector<16x32xf32>
    %253 = tpu.matmul %246, %252, %cst_83 {dimension_numbers = #tpu.dot_dimension_numbers<[1], [0], [0], [1], [0, 0, 1, 1], [], []>} : vector<16x32xf32>, vector<32x32xf32>, vector<16x32xf32> -> vector<16x32xf32>
    %c560 = arith.constant 560 : index
    %c0_84 = arith.constant 0 : index
    %254 = vector.load %arg2[%c560, %c0_84] : memref<752x32xf32, #tpu.memory_space<vmem>>, vector<1x32xf32>
    %255 = vector.broadcast %254 : vector<1x32xf32> to vector<16x32xf32>
    %256 = arith.addf %253, %255 : vector<16x32xf32>
    %c488 = arith.constant 488 : index
    %c0_85 = arith.constant 0 : index
    %257 = vector.load %arg2[%c488, %c0_85] : memref<752x32xf32, #tpu.memory_space<vmem>>, vector<32x32xf32>
    %cst_86 = arith.constant dense<0.000000e+00> : vector<16x32xf32>
    %258 = tpu.matmul %246, %257, %cst_86 {dimension_numbers = #tpu.dot_dimension_numbers<[1], [0], [0], [1], [0, 0, 1, 1], [], []>} : vector<16x32xf32>, vector<32x32xf32>, vector<16x32xf32> -> vector<16x32xf32>
    %c568 = arith.constant 568 : index
    %c0_87 = arith.constant 0 : index
    %259 = vector.load %arg2[%c568, %c0_87] : memref<752x32xf32, #tpu.memory_space<vmem>>, vector<1x32xf32>
    %260 = vector.broadcast %259 : vector<1x32xf32> to vector<16x32xf32>
    %261 = arith.addf %258, %260 : vector<16x32xf32>
    %262 = vector.broadcast %57 : vector<1x32xf32> to vector<16x32xf32>
    %263 = arith.mulf %251, %262 : vector<16x32xf32>
    %cst_88 = arith.constant dense<0.000000e+00> : vector<16x16xf32>
    %264 = tpu.matmul %263, %256, %cst_88 {dimension_numbers = #tpu.dot_dimension_numbers<[1], [1], [0], [0], [0, 0, 1, 0], [], []>} : vector<16x32xf32>, vector<16x32xf32>, vector<16x16xf32> -> vector<16x16xf32>
    %cst_89 = arith.constant 0.353553385 : f32
    %265 = vector.broadcast %cst_89 : f32 to vector<16x16xf32>
    %266 = arith.mulf %264, %265 : vector<16x16xf32>
    %267 = arith.addf %266, %49 : vector<16x16xf32>
    %cst_90 = arith.constant dense<0xFF800000> : vector<16xf32>
    %268 = vector.multi_reduction <maximumf>, %267, %cst_90 [1] : vector<16x16xf32> to vector<16xf32>
    %269 = vector.shape_cast %268 : vector<16xf32> to vector<16x1xf32>
    %270 = vector.broadcast %269 : vector<16x1xf32> to vector<16x16xf32>
    %271 = arith.subf %267, %270 : vector<16x16xf32>
    %272 = math.exp %271 : vector<16x16xf32>
    %cst_91 = arith.constant dense<0.000000e+00> : vector<16xf32>
    %273 = vector.multi_reduction <add>, %272, %cst_91 [1] : vector<16x16xf32> to vector<16xf32>
    %274 = vector.shape_cast %273 : vector<16xf32> to vector<16x1xf32>
    %275 = vector.broadcast %274 : vector<16x1xf32> to vector<16x16xf32>
    %276 = arith.divf %272, %275 : vector<16x16xf32>
    %277 = vector.broadcast %57 : vector<1x32xf32> to vector<16x32xf32>
    %278 = arith.mulf %261, %277 : vector<16x32xf32>
    %cst_92 = arith.constant dense<0.000000e+00> : vector<16x32xf32>
    %279 = tpu.matmul %276, %278, %cst_92 {dimension_numbers = #tpu.dot_dimension_numbers<[1], [0], [0], [1], [0, 0, 1, 1], [], []>} : vector<16x16xf32>, vector<16x32xf32>, vector<16x32xf32> -> vector<16x32xf32>
    %280 = vector.broadcast %64 : vector<1x32xf32> to vector<16x32xf32>
    %281 = arith.mulf %251, %280 : vector<16x32xf32>
    %cst_93 = arith.constant dense<0.000000e+00> : vector<16x16xf32>
    %282 = tpu.matmul %281, %256, %cst_93 {dimension_numbers = #tpu.dot_dimension_numbers<[1], [1], [0], [0], [0, 0, 1, 0], [], []>} : vector<16x32xf32>, vector<16x32xf32>, vector<16x16xf32> -> vector<16x16xf32>
    %cst_94 = arith.constant 0.353553385 : f32
    %283 = vector.broadcast %cst_94 : f32 to vector<16x16xf32>
    %284 = arith.mulf %282, %283 : vector<16x16xf32>
    %285 = arith.addf %284, %49 : vector<16x16xf32>
    %cst_95 = arith.constant dense<0xFF800000> : vector<16xf32>
    %286 = vector.multi_reduction <maximumf>, %285, %cst_95 [1] : vector<16x16xf32> to vector<16xf32>
    %287 = vector.shape_cast %286 : vector<16xf32> to vector<16x1xf32>
    %288 = vector.broadcast %287 : vector<16x1xf32> to vector<16x16xf32>
    %289 = arith.subf %285, %288 : vector<16x16xf32>
    %290 = math.exp %289 : vector<16x16xf32>
    %cst_96 = arith.constant dense<0.000000e+00> : vector<16xf32>
    %291 = vector.multi_reduction <add>, %290, %cst_96 [1] : vector<16x16xf32> to vector<16xf32>
    %292 = vector.shape_cast %291 : vector<16xf32> to vector<16x1xf32>
    %293 = vector.broadcast %292 : vector<16x1xf32> to vector<16x16xf32>
    %294 = arith.divf %290, %293 : vector<16x16xf32>
    %295 = vector.broadcast %64 : vector<1x32xf32> to vector<16x32xf32>
    %296 = arith.mulf %261, %295 : vector<16x32xf32>
    %cst_97 = arith.constant dense<0.000000e+00> : vector<16x32xf32>
    %297 = tpu.matmul %294, %296, %cst_97 {dimension_numbers = #tpu.dot_dimension_numbers<[1], [0], [0], [1], [0, 0, 1, 1], [], []>} : vector<16x16xf32>, vector<16x32xf32>, vector<16x32xf32> -> vector<16x32xf32>
    %298 = arith.addf %279, %297 : vector<16x32xf32>
    %299 = vector.broadcast %71 : vector<1x32xf32> to vector<16x32xf32>
    %300 = arith.mulf %251, %299 : vector<16x32xf32>
    %cst_98 = arith.constant dense<0.000000e+00> : vector<16x16xf32>
    %301 = tpu.matmul %300, %256, %cst_98 {dimension_numbers = #tpu.dot_dimension_numbers<[1], [1], [0], [0], [0, 0, 1, 0], [], []>} : vector<16x32xf32>, vector<16x32xf32>, vector<16x16xf32> -> vector<16x16xf32>
    %cst_99 = arith.constant 0.353553385 : f32
    %302 = vector.broadcast %cst_99 : f32 to vector<16x16xf32>
    %303 = arith.mulf %301, %302 : vector<16x16xf32>
    %304 = arith.addf %303, %49 : vector<16x16xf32>
    %cst_100 = arith.constant dense<0xFF800000> : vector<16xf32>
    %305 = vector.multi_reduction <maximumf>, %304, %cst_100 [1] : vector<16x16xf32> to vector<16xf32>
    %306 = vector.shape_cast %305 : vector<16xf32> to vector<16x1xf32>
    %307 = vector.broadcast %306 : vector<16x1xf32> to vector<16x16xf32>
    %308 = arith.subf %304, %307 : vector<16x16xf32>
    %309 = math.exp %308 : vector<16x16xf32>
    %cst_101 = arith.constant dense<0.000000e+00> : vector<16xf32>
    %310 = vector.multi_reduction <add>, %309, %cst_101 [1] : vector<16x16xf32> to vector<16xf32>
    %311 = vector.shape_cast %310 : vector<16xf32> to vector<16x1xf32>
    %312 = vector.broadcast %311 : vector<16x1xf32> to vector<16x16xf32>
    %313 = arith.divf %309, %312 : vector<16x16xf32>
    %314 = vector.broadcast %71 : vector<1x32xf32> to vector<16x32xf32>
    %315 = arith.mulf %261, %314 : vector<16x32xf32>
    %cst_102 = arith.constant dense<0.000000e+00> : vector<16x32xf32>
    %316 = tpu.matmul %313, %315, %cst_102 {dimension_numbers = #tpu.dot_dimension_numbers<[1], [0], [0], [1], [0, 0, 1, 1], [], []>} : vector<16x16xf32>, vector<16x32xf32>, vector<16x32xf32> -> vector<16x32xf32>
    %317 = arith.addf %298, %316 : vector<16x32xf32>
    %318 = vector.broadcast %78 : vector<1x32xf32> to vector<16x32xf32>
    %319 = arith.mulf %251, %318 : vector<16x32xf32>
    %cst_103 = arith.constant dense<0.000000e+00> : vector<16x16xf32>
    %320 = tpu.matmul %319, %256, %cst_103 {dimension_numbers = #tpu.dot_dimension_numbers<[1], [1], [0], [0], [0, 0, 1, 0], [], []>} : vector<16x32xf32>, vector<16x32xf32>, vector<16x16xf32> -> vector<16x16xf32>
    %cst_104 = arith.constant 0.353553385 : f32
    %321 = vector.broadcast %cst_104 : f32 to vector<16x16xf32>
    %322 = arith.mulf %320, %321 : vector<16x16xf32>
    %323 = arith.addf %322, %49 : vector<16x16xf32>
    %cst_105 = arith.constant dense<0xFF800000> : vector<16xf32>
    %324 = vector.multi_reduction <maximumf>, %323, %cst_105 [1] : vector<16x16xf32> to vector<16xf32>
    %325 = vector.shape_cast %324 : vector<16xf32> to vector<16x1xf32>
    %326 = vector.broadcast %325 : vector<16x1xf32> to vector<16x16xf32>
    %327 = arith.subf %323, %326 : vector<16x16xf32>
    %328 = math.exp %327 : vector<16x16xf32>
    %cst_106 = arith.constant dense<0.000000e+00> : vector<16xf32>
    %329 = vector.multi_reduction <add>, %328, %cst_106 [1] : vector<16x16xf32> to vector<16xf32>
    %330 = vector.shape_cast %329 : vector<16xf32> to vector<16x1xf32>
    %331 = vector.broadcast %330 : vector<16x1xf32> to vector<16x16xf32>
    %332 = arith.divf %328, %331 : vector<16x16xf32>
    %333 = vector.broadcast %78 : vector<1x32xf32> to vector<16x32xf32>
    %334 = arith.mulf %261, %333 : vector<16x32xf32>
    %cst_107 = arith.constant dense<0.000000e+00> : vector<16x32xf32>
    %335 = tpu.matmul %332, %334, %cst_107 {dimension_numbers = #tpu.dot_dimension_numbers<[1], [0], [0], [1], [0, 0, 1, 1], [], []>} : vector<16x16xf32>, vector<16x32xf32>, vector<16x32xf32> -> vector<16x32xf32>
    %336 = arith.addf %317, %335 : vector<16x32xf32>
    %c520 = arith.constant 520 : index
    %c0_108 = arith.constant 0 : index
    %337 = vector.load %arg2[%c520, %c0_108] : memref<752x32xf32, #tpu.memory_space<vmem>>, vector<32x32xf32>
    %cst_109 = arith.constant dense<0.000000e+00> : vector<16x32xf32>
    %338 = tpu.matmul %336, %337, %cst_109 {dimension_numbers = #tpu.dot_dimension_numbers<[1], [0], [0], [1], [0, 0, 1, 1], [], []>} : vector<16x32xf32>, vector<32x32xf32>, vector<16x32xf32> -> vector<16x32xf32>
    %c576 = arith.constant 576 : index
    %c0_110 = arith.constant 0 : index
    %339 = vector.load %arg2[%c576, %c0_110] : memref<752x32xf32, #tpu.memory_space<vmem>>, vector<1x32xf32>
    %340 = vector.broadcast %339 : vector<1x32xf32> to vector<16x32xf32>
    %341 = arith.addf %338, %340 : vector<16x32xf32>
    %342 = arith.addf %341, %246 : vector<16x32xf32>
    %c584 = arith.constant 584 : index
    %c0_111 = arith.constant 0 : index
    %343 = vector.load %arg2[%c584, %c0_111] : memref<752x32xf32, #tpu.memory_space<vmem>>, vector<1x32xf32>
    %c592 = arith.constant 592 : index
    %c0_112 = arith.constant 0 : index
    %344 = vector.load %arg2[%c592, %c0_112] : memref<752x32xf32, #tpu.memory_space<vmem>>, vector<1x32xf32>
    %cst_113 = arith.constant dense<0.000000e+00> : vector<16xf32>
    %345 = vector.multi_reduction <add>, %342, %cst_113 [1] : vector<16x32xf32> to vector<16xf32>
    %346 = vector.shape_cast %345 : vector<16xf32> to vector<16x1xf32>
    %cst_114 = arith.constant 3.200000e+01 : f32
    %347 = vector.broadcast %cst_114 : f32 to vector<16x1xf32>
    %348 = arith.divf %346, %347 : vector<16x1xf32>
    %349 = arith.mulf %342, %342 : vector<16x32xf32>
    %cst_115 = arith.constant dense<0.000000e+00> : vector<16xf32>
    %350 = vector.multi_reduction <add>, %349, %cst_115 [1] : vector<16x32xf32> to vector<16xf32>
    %351 = vector.shape_cast %350 : vector<16xf32> to vector<16x1xf32>
    %cst_116 = arith.constant 3.200000e+01 : f32
    %352 = vector.broadcast %cst_116 : f32 to vector<16x1xf32>
    %353 = arith.divf %351, %352 : vector<16x1xf32>
    %354 = arith.mulf %348, %348 : vector<16x1xf32>
    %355 = arith.subf %353, %354 : vector<16x1xf32>
    %356 = vector.broadcast %348 : vector<16x1xf32> to vector<16x32xf32>
    %357 = arith.subf %342, %356 : vector<16x32xf32>
    %cst_117 = arith.constant 9.99999996E-13 : f32
    %358 = vector.broadcast %cst_117 : f32 to vector<16x1xf32>
    %359 = arith.addf %355, %358 : vector<16x1xf32>
    %360 = math.rsqrt %359 : vector<16x1xf32>
    %361 = vector.broadcast %360 : vector<16x1xf32> to vector<16x32xf32>
    %362 = arith.mulf %357, %361 : vector<16x32xf32>
    %363 = vector.broadcast %343 : vector<1x32xf32> to vector<16x32xf32>
    %364 = arith.mulf %362, %363 : vector<16x32xf32>
    %365 = vector.broadcast %344 : vector<1x32xf32> to vector<16x32xf32>
    %366 = arith.addf %364, %365 : vector<16x32xf32>
    %c40 = arith.constant 40 : index
    %c0_118 = arith.constant 0 : index
    %367 = vector.load %arg3[%c40, %c0_118] : memref<120x128xf32, #tpu.memory_space<vmem>>, vector<32x128xf32>
    %cst_119 = arith.constant dense<0.000000e+00> : vector<16x128xf32>
    %368 = tpu.matmul %366, %367, %cst_119 {dimension_numbers = #tpu.dot_dimension_numbers<[1], [0], [0], [1], [0, 0, 1, 1], [], []>} : vector<16x32xf32>, vector<32x128xf32>, vector<16x128xf32> -> vector<16x128xf32>
    %c72 = arith.constant 72 : index
    %c0_120 = arith.constant 0 : index
    %369 = vector.load %arg3[%c72, %c0_120] : memref<120x128xf32, #tpu.memory_space<vmem>>, vector<1x128xf32>
    %370 = vector.broadcast %369 : vector<1x128xf32> to vector<16x128xf32>
    %371 = arith.addf %368, %370 : vector<16x128xf32>
    %372 = arith.mulf %371, %371 : vector<16x128xf32>
    %373 = arith.mulf %371, %372 : vector<16x128xf32>
    %cst_121 = arith.constant 4.471500e-02 : f32
    %374 = vector.broadcast %cst_121 : f32 to vector<16x128xf32>
    %375 = arith.mulf %374, %373 : vector<16x128xf32>
    %376 = arith.addf %371, %375 : vector<16x128xf32>
    %cst_122 = arith.constant 0.797884583 : f32
    %377 = vector.broadcast %cst_122 : f32 to vector<16x128xf32>
    %378 = arith.mulf %377, %376 : vector<16x128xf32>
    %379 = math.tanh %378 : vector<16x128xf32>
    %cst_123 = arith.constant 1.000000e+00 : f32
    %380 = vector.broadcast %cst_123 : f32 to vector<16x128xf32>
    %381 = arith.addf %380, %379 : vector<16x128xf32>
    %cst_124 = arith.constant 5.000000e-01 : f32
    %382 = vector.broadcast %cst_124 : f32 to vector<16x128xf32>
    %383 = arith.mulf %382, %381 : vector<16x128xf32>
    %384 = arith.mulf %371, %383 : vector<16x128xf32>
    %c600 = arith.constant 600 : index
    %c0_125 = arith.constant 0 : index
    %385 = vector.load %arg2[%c600, %c0_125] : memref<752x32xf32, #tpu.memory_space<vmem>>, vector<128x32xf32>
    %cst_126 = arith.constant dense<0.000000e+00> : vector<16x32xf32>
    %386 = tpu.matmul %384, %385, %cst_126 {dimension_numbers = #tpu.dot_dimension_numbers<[1], [0], [0], [1], [0, 0, 1, 1], [], []>} : vector<16x128xf32>, vector<128x32xf32>, vector<16x32xf32> -> vector<16x32xf32>
    %c728 = arith.constant 728 : index
    %c0_127 = arith.constant 0 : index
    %387 = vector.load %arg2[%c728, %c0_127] : memref<752x32xf32, #tpu.memory_space<vmem>>, vector<1x32xf32>
    %388 = vector.broadcast %387 : vector<1x32xf32> to vector<16x32xf32>
    %389 = arith.addf %386, %388 : vector<16x32xf32>
    %390 = arith.addf %389, %366 : vector<16x32xf32>
    %c736 = arith.constant 736 : index
    %c0_128 = arith.constant 0 : index
    %391 = vector.load %arg2[%c736, %c0_128] : memref<752x32xf32, #tpu.memory_space<vmem>>, vector<1x32xf32>
    %c744 = arith.constant 744 : index
    %c0_129 = arith.constant 0 : index
    %392 = vector.load %arg2[%c744, %c0_129] : memref<752x32xf32, #tpu.memory_space<vmem>>, vector<1x32xf32>
    %cst_130 = arith.constant dense<0.000000e+00> : vector<16xf32>
    %393 = vector.multi_reduction <add>, %390, %cst_130 [1] : vector<16x32xf32> to vector<16xf32>
    %394 = vector.shape_cast %393 : vector<16xf32> to vector<16x1xf32>
    %cst_131 = arith.constant 3.200000e+01 : f32
    %395 = vector.broadcast %cst_131 : f32 to vector<16x1xf32>
    %396 = arith.divf %394, %395 : vector<16x1xf32>
    %397 = arith.mulf %390, %390 : vector<16x32xf32>
    %cst_132 = arith.constant dense<0.000000e+00> : vector<16xf32>
    %398 = vector.multi_reduction <add>, %397, %cst_132 [1] : vector<16x32xf32> to vector<16xf32>
    %399 = vector.shape_cast %398 : vector<16xf32> to vector<16x1xf32>
    %cst_133 = arith.constant 3.200000e+01 : f32
    %400 = vector.broadcast %cst_133 : f32 to vector<16x1xf32>
    %401 = arith.divf %399, %400 : vector<16x1xf32>
    %402 = arith.mulf %396, %396 : vector<16x1xf32>
    %403 = arith.subf %401, %402 : vector<16x1xf32>
    %404 = vector.broadcast %396 : vector<16x1xf32> to vector<16x32xf32>
    %405 = arith.subf %390, %404 : vector<16x32xf32>
    %cst_134 = arith.constant 9.99999996E-13 : f32
    %406 = vector.broadcast %cst_134 : f32 to vector<16x1xf32>
    %407 = arith.addf %403, %406 : vector<16x1xf32>
    %408 = math.rsqrt %407 : vector<16x1xf32>
    %409 = vector.broadcast %408 : vector<16x1xf32> to vector<16x32xf32>
    %410 = arith.mulf %405, %409 : vector<16x32xf32>
    %411 = vector.broadcast %391 : vector<1x32xf32> to vector<16x32xf32>
    %412 = arith.mulf %410, %411 : vector<16x32xf32>
    %413 = vector.broadcast %392 : vector<1x32xf32> to vector<16x32xf32>
    %414 = arith.addf %412, %413 : vector<16x32xf32>
    %415 = tpu.iota {dimensions = array<i32: 0>} : vector<2x16xi32>
    %416 = tpu.iota {dimensions = array<i32: 1>} : vector<2x16xi32>
    %c8_i32_135 = arith.constant 8 : i32
    %417 = vector.broadcast %c8_i32_135 : i32 to vector<2x16xi32>
    %418 = arith.muli %415, %417 : vector<2x16xi32>
    %419 = arith.cmpi eq, %416, %418 : vector<2x16xi32>
    %420 = arith.extui %419 : vector<2x16xi1> to vector<2x16xi32>
    %421 = arith.sitofp %420 : vector<2x16xi32> to vector<2x16xf32>
    %cst_136 = arith.constant dense<0.000000e+00> : vector<2x32xf32>
    %422 = tpu.matmul %421, %414, %cst_136 {dimension_numbers = #tpu.dot_dimension_numbers<[1], [0], [0], [1], [0, 0, 1, 1], [], []>} : vector<2x16xf32>, vector<16x32xf32>, vector<2x32xf32> -> vector<2x32xf32>
    %c80_137 = arith.constant 80 : index
    %c0_138 = arith.constant 0 : index
    %423 = vector.load %arg3[%c80_137, %c0_138] : memref<120x128xf32, #tpu.memory_space<vmem>>, vector<32x128xf32>
    %cst_139 = arith.constant dense<0.000000e+00> : vector<2x128xf32>
    %424 = tpu.matmul %422, %423, %cst_139 {dimension_numbers = #tpu.dot_dimension_numbers<[1], [0], [0], [1], [0, 0, 1, 1], [], []>} : vector<2x32xf32>, vector<32x128xf32>, vector<2x128xf32> -> vector<2x128xf32>
    %c112 = arith.constant 112 : index
    %c0_140 = arith.constant 0 : index
    %425 = vector.load %arg3[%c112, %c0_140] : memref<120x128xf32, #tpu.memory_space<vmem>>, vector<1x128xf32>
    %426 = vector.broadcast %425 : vector<1x128xf32> to vector<2x128xf32>
    %427 = arith.addf %424, %426 : vector<2x128xf32>
    %c0_141 = arith.constant 0 : index
    %c0_142 = arith.constant 0 : index
    %428 = vector.load %arg4[%c0_141, %c0_142] : memref<2x128xf32, #tpu.memory_space<vmem>>, vector<2x128xf32>
    tpu.vector_store %arg4[%c0_141, %c0_142], %427 {strides = array<i32>} : memref<2x128xf32, #tpu.memory_space<vmem>>, vector<2x128xf32>,
    return
  }
}

</mosaic_0001>

<llo_original>
// kernel: forward.1
$region0: #{forward.1}
  #allocation0 [shape = 'u32[]', space=smem, size = 0x4, offset = 0x4, fixed_abs, tag = 'smem constant byte address 0x4 - core index']
  #allocation1 [shape = 'u32[72,128]{1,0:T(1,128)}', space=vmem, size = 0x9000, scoped, tag = 'internal scratch']
  %s0 = inlined_call_operand.vmem [shape: s32[16,1], index: 0, kind: input, shape index: {}]
  %s1 = inlined_call_operand.vmem [shape: f32[1,16], index: 1, kind: input, shape index: {}]
  %s2 = inlined_call_operand.vmem [shape: f32[752,32], index: 2, kind: input, shape index: {}]
  %s3 = inlined_call_operand.vmem [shape: f32[120,128], index: 3, kind: input, shape index: {}]
  %s4 = inlined_call_operand.vmem [shape: f32[2,128], index: 4, kind: output, shape index: {}]
  %s5 = sld [smem:[#allocation0]]
  $region26: #{forward.1} parent=0
    _
  %s7 = ssub.s32 1, %s5
  %s8 = scalar_select 0, %s7, %s5
  // Predicated region
  $region2: #{forward.1} parent=0 // pred_check
    _
  $region3: #{forward.1} parent=0 // pred_check_branch
    %10 = sbr.rel (0) target = $region5
  $region4: #{forward.1} parent=0 // pred_region
    _
  $region5: #{forward.1} parent=0 // pred_fallthru
    _
  // Predicated region
  $region6: #{forward.1} parent=0 // pred_check
    _
  $region7: #{forward.1} parent=0 // pred_check_branch
    %12 = sbr.rel (0) target = $region9
  $region8: #{forward.1} parent=0 // pred_region
    _
  $region9: #{forward.1} parent=0 // pred_fallthru
    _
  // Predicated region
  $region10: #{forward.1} parent=0 // pred_check
    _
  $region11: #{forward.1} parent=0 // pred_check_branch
    %14 = sbr.rel (0) target = $region13
  $region12: #{forward.1} parent=0 // pred_region
    _
  $region13: #{forward.1} parent=0 // pred_fallthru
    _
  // Predicated region
  $region14: #{forward.1} parent=0 // pred_check
    _
  $region15: #{forward.1} parent=0 // pred_check_branch
    %16 = sbr.rel (0) target = $region17
  $region16: #{forward.1} parent=0 // pred_region
    _
  $region17: #{forward.1} parent=0 // pred_fallthru
    _
  %v17 = vld [vmem:[%s0] sm:$0xff]
  %v18 = vld [vmem:[%s0 + $0x8] sm:$0xff]
  %v19 = vlaneseq
  %v20 = vand.u32 %v19, 127
  %21 = vset.pattern.permute.xlu0 0
  %22 = vperm.xlu0 %21, %v17
  %v23 = vpop.permute.xlu0 %22
  %24 = vset.pattern.permute.xlu0 0
  %25 = vperm.xlu0 %24, %v18
  %v26 = vpop.permute.xlu0 %25
  %vm27 = vcmp.eq.s32.totalorder %v23, %v20
  %vm28 = vcmp.eq.s32.totalorder %v26, %v20
  %v29 = vsel %vm27, 1, 0
  %v30 = vsel %vm28, 1, 0
  %v31 = vcvt.s32.f32 %v29
  %v32 = vcvt.s32.f32 %v30
  %v33 = vld [vmem:[%s2] sm:$0xff]
  %v34 = vld [vmem:[%s2 + $0x8] sm:$0xff]
  %v35 = vld [vmem:[%s2 + $0x10] sm:$0xff]
  %v36 = vld [vmem:[%s2 + $0x18] sm:$0xff]
  %v37 = vld [vmem:[%s2 + $0x20] sm:$0xff]
  %v38 = vld [vmem:[%s2 + $0x28] sm:$0xff]
  %v39 = vld [vmem:[%s2 + $0x30] sm:$0xff]
  %v40 = vld [vmem:[%s2 + $0x38] sm:$0xff]
  %v41 = vld [vmem:[%s2 + $0x40] sm:$0xff]
  %v42 = vld [vmem:[%s2 + $0x48] sm:$0xff]
  %vm43 = vcmask 523264
  %v45 = vsel %vm43, %v31, 0
  %v48 = vsel %vm43, %v32, 0
  %50 = vmatpush.msra.mxu0 0.0
  %51 = vmatpush.msra.mxu0 0.0
  %52 = vmatpush.msra.mxu0 0.0
  %53 = vmatpush.msra.mxu0 0.0
  %54 = vmatpush.msra.mxu0 0.0
  %55 = vmatpush.msra.mxu0 0.0
  %56 = vmatpush.msra.mxu0 0.0
  %57 = vmatpush.msra.mxu0 0.0
  %58 = vmatpush.msra.mxu0 %v40
  %59 = vmatpush.msra.mxu0 %v39
  %60 = vmatpush.msra.mxu0 %v38
  %61 = vmatpush.msra.mxu0 %v37
  %62 = vmatpush.msra.mxu0 %v36
  %63 = vmatpush.msra.mxu0 %v35
  %64 = vmatpush.msra.mxu0 %v34
  %65 = vmatpush.msra.mxu0 %v33
  %66 = vmatmul.f32.gmra.mxu0 %v45
  %v67 = vpop.f32.mrf.mxu0
  %v68 = vadd.f32 %v41, %v67
  %69 = vmatmul.f32.gmra.mxu0 %v48
  %v70 = vpop.f32.mrf.mxu0
  %v71 = vadd.f32 %v42, %v70
  %72 = vdwg.mxu0
  %v73 = vld [vmem:[%s2 + $0x50] sm:$0x1]
  %v74 = vld [vmem:[%s2 + $0x58] sm:$0x1]
  %vm75 = vcmask 261120
  %v76 = vsel %vm75, %v68, 0.0
  %77 = vadd.xlane.f32.xlu0 %v76
  %v78 = vpop.xlane.xlu0 %77
  %v79 = vsel %vm75, %v71, 0.0
  %80 = vadd.xlane.f32.xlu0 %v79
  %v81 = vpop.xlane.xlu0 %80
  %v82 = vrcp.pop 32.0
  %v83 = vmul.f32 32.0, %v82
  %v84 = vsub.f32 1.0, %v83
  %v85 = vmul.f32 %v82, %v84
  %v86 = vadd.f32 %v82, %v85
  %vm87 = vweird.f32 %v82
  %v88 = vsel %vm87, %v82, %v86
  %v89 = vmul.f32 %v78, %v88
  %v90 = vmul.f32 %v81, %v88
  %v91 = vmul.f32 %v68, %v68
  %v92 = vmul.f32 %v71, %v71
  %v93 = vsel %vm75, %v91, 0.0
  %94 = vadd.xlane.f32.xlu0 %v93
  %v95 = vpop.xlane.xlu0 %94
  %v96 = vsel %vm75, %v92, 0.0
  %97 = vadd.xlane.f32.xlu0 %v96
  %v98 = vpop.xlane.xlu0 %97
  %v99 = vmul.f32 %v95, %v88
  %v100 = vmul.f32 %v98, %v88
  %v101 = vmul.f32 %v89, %v89
  %v102 = vmul.f32 %v90, %v90
  %v103 = vsub.f32 %v99, %v101
  %v104 = vsub.f32 %v100, %v102
  %v105 = vsub.f32 %v68, %v89
  %v106 = vsub.f32 %v71, %v90
  %v107 = vadd.f32 %v103, 1e-12
  %v108 = vadd.f32 %v104, 1e-12
  %v109 = vrsqrt.pop %v107
  %v110 = vmul.f32 %v109, %v107
  %v111 = vmul.f32 %v110, %v109
  %v112 = vmul.f32 0.5, %v111
  %v113 = vsub.f32 1.5, %v112
  %v114 = vmul.f32 %v109, %v113
  %vm115 = vweird.f32 %v107
  %vm116 = vweird.f32 %v109
  %vm117 = vmor %vm115, %vm116
  %v118 = vsel %vm117, %v109, %v114
  %v119 = vrsqrt.pop %v108
  %v120 = vmul.f32 %v119, %v108
  %v121 = vmul.f32 %v120, %v119
  %v122 = vmul.f32 0.5, %v121
  %v123 = vsub.f32 1.5, %v122
  %v124 = vmul.f32 %v119, %v123
  %vm125 = vweird.f32 %v108
  %vm126 = vweird.f32 %v119
  %vm127 = vmor %vm125, %vm126
  %v128 = vsel %vm127, %v119, %v124
  %v129 = vmul.f32 %v105, %v118
  %v130 = vmul.f32 %v106, %v128
  %v131 = vperm.slane %v73, 0
  %v132 = vmul.f32 %v129, %v131
  %v133 = vmul.f32 %v130, %v131
  %v134 = vperm.slane %v74, 0
  %v135 = vadd.f32 %v132, %v134
  %v136 = vadd.f32 %v133, %v134
  %v137 = vlaneseq
  %v138 = vshrl.u32 %v137, 7
  %v139 = vadd.s32 %v138, 8
  %v140 = vld [vmem:[%s1] sm:$0x1]
  %vm141 = vcmp.gt.f32.partialorder %v140, 0.5
  %vm142 = vcmp.ge.s32.totalorder %v138, 8
  %vm143 = vcmp.ge.s32.totalorder %v139, 8
  %vm144 = vcmp.ge.s32.totalorder %v20, 8
  %vm145 = vmxor %vm142, %vm144
  %vm146 = vmxor %vm143, %vm144
  %vm147 = vmxor %vm145, 1
  %vm148 = vmxor %vm146, 1
  %v149 = vsel %vm141, 1, 0
  %v150 = vperm.slane %v149, 0
  %vm151 = vcmp.eq.s32.totalorder %v150, 1
  %vm152 = vmand %vm151, %vm147
  %vm153 = vmand %vm151, %vm148
  %v154 = vsel %vm152, 0.0, -1e+09
  %v155 = vsel %vm153, 0.0, -1e+09
  %vm156 = vcmp.ge.s32.totalorder %v20, 0
  %vm157 = vcmp.lt.s32.totalorder %v20, 8
  %vm158 = vmand %vm156, %vm157
  %v159 = vsel %vm158, 1, 0
  %v160 = vcvt.s32.f32 %v159
  %vm161 = vcmp.lt.s32.totalorder %v20, 16
  %vm162 = vmand %vm144, %vm161
  %v163 = vsel %vm162, 1, 0
  %v164 = vcvt.s32.f32 %v163
  %vm165 = vcmp.ge.s32.totalorder %v20, 16
  %vm166 = vcmp.lt.s32.totalorder %v20, 24
  %vm167 = vmand %vm165, %vm166
  %v168 = vsel %vm167, 1, 0
  %v169 = vcvt.s32.f32 %v168
  %vm170 = vcmp.ge.s32.totalorder %v20, 24
  %vm171 = vcmp.lt.s32.totalorder %v20, 32
  %vm172 = vmand %vm170, %vm171
  %v173 = vsel %vm172, 1, 0
  %v174 = vcvt.s32.f32 %v173
  %v175 = vld [vmem:[%s2 + $0x60] sm:$0xff]
  %v176 = vld [vmem:[%s2 + $0x68] sm:$0xff]
  %v177 = vld [vmem:[%s2 + $0x70] sm:$0xff]
  %v178 = vld [vmem:[%s2 + $0x78] sm:$0xff]
  %v179 = vld [vmem:[%s2 + $0xe0] sm:$0x1]
  %v180 = vperm.slane %v179, 0
  %v182 = vsel %vm75, %v135, 0
  %v185 = vsel %vm75, %v136, 0
  %187 = vmatpush.msra.mxu0 0.0
  %188 = vmatpush.msra.mxu0 0.0
  %189 = vmatpush.msra.mxu0 0.0
  %190 = vmatpush.msra.mxu0 0.0
  %191 = vmatpush.msra.mxu0 0.0
  %192 = vmatpush.msra.mxu0 0.0
  %193 = vmatpush.msra.mxu0 0.0
  %194 = vmatpush.msra.mxu0 0.0
  %195 = vmatpush.msra.mxu0 0.0
  %196 = vmatpush.msra.mxu0 0.0
  %197 = vmatpush.msra.mxu0 0.0
  %198 = vmatpush.msra.mxu0 0.0
  %199 = vmatpush.msra.mxu0 %v178
  %200 = vmatpush.msra.mxu0 %v177
  %201 = vmatpush.msra.mxu0 %v176
  %202 = vmatpush.msra.mxu0 %v175
  %203 = vmatmul.f32.gmra.mxu0 %v182
  %v204 = vpop.f32.mrf.mxu0
  %v205 = vadd.f32 %v180, %v204
  %206 = vmatmul.f32.gmra.mxu0 %v185
  %v207 = vpop.f32.mrf.mxu0
  %v208 = vadd.f32 %v180, %v207
  %209 = vdwg.mxu0
  %v210 = vld [vmem:[%s2 + $0x80] sm:$0xff]
  %v211 = vld [vmem:[%s2 + $0x88] sm:$0xff]
  %v212 = vld [vmem:[%s2 + $0x90] sm:$0xff]
  %v213 = vld [vmem:[%s2 + $0x98] sm:$0xff]
  %v214 = vld [vmem:[%s2 + $0xe8] sm:$0x1]
  %v215 = vperm.slane %v214, 0
  %216 = vmatpush.msra.mxu0 0.0
  %217 = vmatpush.msra.mxu0 0.0
  %218 = vmatpush.msra.mxu0 0.0
  %219 = vmatpush.msra.mxu0 0.0
  %220 = vmatpush.msra.mxu0 0.0
  %221 = vmatpush.msra.mxu0 0.0
  %222 = vmatpush.msra.mxu0 0.0
  %223 = vmatpush.msra.mxu0 0.0
  %224 = vmatpush.msra.mxu0 0.0
  %225 = vmatpush.msra.mxu0 0.0
  %226 = vmatpush.msra.mxu0 0.0
  %227 = vmatpush.msra.mxu0 0.0
  %228 = vmatpush.msra.mxu0 %v213
  %229 = vmatpush.msra.mxu0 %v212
  %230 = vmatpush.msra.mxu0 %v211
  %231 = vmatpush.msra.mxu0 %v210
  %232 = vmatmul.f32.gmra.mxu0 %v182
  %v233 = vpop.f32.mrf.mxu0
  %v234 = vadd.f32 %v215, %v233
  %235 = vmatmul.f32.gmra.mxu0 %v185
  %v236 = vpop.f32.mrf.mxu0
  %v237 = vadd.f32 %v215, %v236
  %238 = vdwg.mxu0
  %v239 = vld [vmem:[%s2 + $0xa0] sm:$0xff]
  %v240 = vld [vmem:[%s2 + $0xa8] sm:$0xff]
  %v241 = vld [vmem:[%s2 + $0xb0] sm:$0xff]
  %v242 = vld [vmem:[%s2 + $0xb8] sm:$0xff]
  %v243 = vld [vmem:[%s2 + $0xf0] sm:$0x1]
  %v244 = vperm.slane %v243, 0
  %245 = vmatpush.msra.mxu0 0.0
  %246 = vmatpush.msra.mxu0 0.0
  %247 = vmatpush.msra.mxu0 0.0
  %248 = vmatpush.msra.mxu0 0.0
  %249 = vmatpush.msra.mxu0 0.0
  %250 = vmatpush.msra.mxu0 0.0
  %251 = vmatpush.msra.mxu0 0.0
  %252 = vmatpush.msra.mxu0 0.0
  %253 = vmatpush.msra.mxu0 0.0
  %254 = vmatpush.msra.mxu0 0.0
  %255 = vmatpush.msra.mxu0 0.0
  %256 = vmatpush.msra.mxu0 0.0
  %257 = vmatpush.msra.mxu0 %v242
  %258 = vmatpush.msra.mxu0 %v241
  %259 = vmatpush.msra.mxu0 %v240
  %260 = vmatpush.msra.mxu0 %v239
  %261 = vmatmul.f32.gmra.mxu0 %v182
  %v262 = vpop.f32.mrf.mxu0
  %v263 = vadd.f32 %v244, %v262
  %264 = vmatmul.f32.gmra.mxu0 %v185
  %v265 = vpop.f32.mrf.mxu0
  %v266 = vadd.f32 %v244, %v265
  %267 = vdwg.mxu0
  %v268 = vmul.f32 %v205, %v160
  %v269 = vmul.f32 %v208, %v160
  %v271 = vsel %vm75, %v268, 0
  %v274 = vsel %vm75, %v269, 0
  %v277 = vsel %vm75, %v234, 0
  %v280 = vsel %vm75, %v237, 0
  %282 = vmatpush.xpose.msra.mxu0 0.0
  %283 = vmatpush.xpose.msra.mxu0 0.0
  %284 = vmatpush.xpose.msra.mxu0 0.0
  %285 = vmatpush.xpose.msra.mxu0 0.0
  %286 = vmatpush.xpose.msra.mxu0 0.0
  %287 = vmatpush.xpose.msra.mxu0 0.0
  %288 = vmatpush.xpose.msra.mxu0 0.0
  %289 = vmatpush.xpose.msra.mxu0 0.0
  %290 = vmatpush.xpose.msra.mxu0 0.0
  %291 = vmatpush.xpose.msra.mxu0 0.0
  %292 = vmatpush.xpose.msra.mxu0 0.0
  %293 = vmatpush.xpose.msra.mxu0 0.0
  %294 = vmatpush.xpose.msra.mxu0 0.0
  %295 = vmatpush.xpose.msra.mxu0 0.0
  %296 = vmatpush.xpose.msra.mxu0 %v280
  %297 = vmatpush.xpose.msra.mxu0 %v277
  %298 = vmatmul.f32.gmra.mxu0 %v271
  %v299 = vpop.f32.mrf.mxu0
  %v300 = vadd.f32 0.0, %v299
  %301 = vmatmul.f32.gmra.mxu0 %v274
  %v302 = vpop.f32.mrf.mxu0
  %v303 = vadd.f32 0.0, %v302
  %304 = vdwg.mxu0
  %v305 = vmul.f32 %v300, 0.35355338
  %v306 = vmul.f32 %v303, 0.35355338
  %v307 = vadd.f32 %v305, %v154
  %v308 = vadd.f32 %v306, %v155
  %vm309 = vcmask 130048
  %v310 = vsel %vm309, %v307, -inf
  %311 = vmax.xlane.f32.xlu0 %v310
  %v312 = vpop.xlane.xlu0 %311
  %v313 = vsel %vm309, %v308, -inf
  %314 = vmax.xlane.f32.xlu0 %v313
  %v315 = vpop.xlane.xlu0 %314
  %v316 = vsub.f32 %v307, %v312
  %v317 = vsub.f32 %v308, %v315
  %v318 = vmul.f32 %v316, 1.442695
  %v319 = vpow.pop %v318
  %v320 = vmul.f32 %v317, 1.442695
  %v321 = vpow.pop %v320
  %v322 = vsel %vm309, %v319, 0.0
  %323 = vadd.xlane.f32.xlu0 %v322
  %v324 = vpop.xlane.xlu0 %323
  %v325 = vsel %vm309, %v321, 0.0
  %326 = vadd.xlane.f32.xlu0 %v325
  %v327 = vpop.xlane.xlu0 %326
  %v328 = vrcp.pop %v324
  %v329 = vmul.f32 %v324, %v328
  %v330 = vsub.f32 1.0, %v329
  %v331 = vmul.f32 %v328, %v330
  %v332 = vadd.f32 %v328, %v331
  %vm333 = vweird.f32 %v324
  %vm334 = vweird.f32 %v328
  %vm335 = vmor %vm333, %vm334
  %v336 = vsel %vm335, %v328, %v332
  %v337 = vand.u32 2147483647, %v324
  %vm338 = vcmp.eq.f32.partialorder %v337, 8.507059e+37
  %v339 = vand.u32 %v324, 2147483648
  %v340 = vor.u32 1.1754944e-38, %v339
  %v341 = vsel %vm338, %v340, %v336
  %v342 = vmul.f32 %v319, %v341
  %v343 = vrcp.pop %v327
  %v344 = vmul.f32 %v327, %v343
  %v345 = vsub.f32 1.0, %v344
  %v346 = vmul.f32 %v343, %v345
  %v347 = vadd.f32 %v343, %v346
  %vm348 = vweird.f32 %v327
  %vm349 = vweird.f32 %v343
  %vm350 = vmor %vm348, %vm349
  %v351 = vsel %vm350, %v343, %v347
  %v352 = vand.u32 2147483647, %v327
  %vm353 = vcmp.eq.f32.partialorder %v352, 8.507059e+37
  %v354 = vand.u32 %v327, 2147483648
  %v355 = vor.u32 1.1754944e-38, %v354
  %v356 = vsel %vm353, %v355, %v351
  %v357 = vmul.f32 %v321, %v356
  %v358 = vmul.f32 %v263, %v160
  %v359 = vmul.f32 %v266, %v160
  %v360 = vmul.f32 %v205, %v164
  %v361 = vmul.f32 %v208, %v164
  %v363 = vsel %vm75, %v360, 0
  %v366 = vsel %vm75, %v361, 0
  %368 = vmatpush.xpose.msra.mxu0 0.0
  %369 = vmatpush.xpose.msra.mxu0 0.0
  %370 = vmatpush.xpose.msra.mxu0 0.0
  %371 = vmatpush.xpose.msra.mxu0 0.0
  %372 = vmatpush.xpose.msra.mxu0 0.0
  %373 = vmatpush.xpose.msra.mxu0 0.0
  %374 = vmatpush.xpose.msra.mxu0 0.0
  %375 = vmatpush.xpose.msra.mxu0 0.0
  %376 = vmatpush.xpose.msra.mxu0 0.0
  %377 = vmatpush.xpose.msra.mxu0 0.0
  %378 = vmatpush.xpose.msra.mxu0 0.0
  %379 = vmatpush.xpose.msra.mxu0 0.0
  %380 = vmatpush.xpose.msra.mxu0 0.0
  %381 = vmatpush.xpose.msra.mxu0 0.0
  %382 = vmatpush.xpose.msra.mxu0 %v280
  %383 = vmatpush.xpose.msra.mxu0 %v277
  %384 = vmatmul.f32.gmra.mxu0 %v363
  %v385 = vpop.f32.mrf.mxu0
  %v386 = vadd.f32 0.0, %v385
  %387 = vmatmul.f32.gmra.mxu0 %v366
  %v388 = vpop.f32.mrf.mxu0
  %v389 = vadd.f32 0.0, %v388
  %390 = vdwg.mxu0
  %v391 = vmul.f32 %v386, 0.35355338
  %v392 = vmul.f32 %v389, 0.35355338
  %v393 = vadd.f32 %v391, %v154
  %v394 = vadd.f32 %v392, %v155
  %v395 = vsel %vm309, %v393, -inf
  %396 = vmax.xlane.f32.xlu0 %v395
  %v397 = vpop.xlane.xlu0 %396
  %v398 = vsel %vm309, %v394, -inf
  %399 = vmax.xlane.f32.xlu0 %v398
  %v400 = vpop.xlane.xlu0 %399
  %v401 = vsub.f32 %v393, %v397
  %v402 = vsub.f32 %v394, %v400
  %v403 = vmul.f32 %v401, 1.442695
  %v404 = vpow.pop %v403
  %v405 = vmul.f32 %v402, 1.442695
  %v406 = vpow.pop %v405
  %v407 = vsel %vm309, %v404, 0.0
  %408 = vadd.xlane.f32.xlu0 %v407
  %v409 = vpop.xlane.xlu0 %408
  %v410 = vsel %vm309, %v406, 0.0
  %411 = vadd.xlane.f32.xlu0 %v410
  %v412 = vpop.xlane.xlu0 %411
  %v413 = vrcp.pop %v409
  %v414 = vmul.f32 %v409, %v413
  %v415 = vsub.f32 1.0, %v414
  %v416 = vmul.f32 %v413, %v415
  %v417 = vadd.f32 %v413, %v416
  %vm418 = vweird.f32 %v409
  %vm419 = vweird.f32 %v413
  %vm420 = vmor %vm418, %vm419
  %v421 = vsel %vm420, %v413, %v417
  %v422 = vand.u32 2147483647, %v409
  %vm423 = vcmp.eq.f32.partialorder %v422, 8.507059e+37
  %v424 = vand.u32 %v409, 2147483648
  %v425 = vor.u32 1.1754944e-38, %v424
  %v426 = vsel %vm423, %v425, %v421
  %v427 = vmul.f32 %v404, %v426
  %v428 = vrcp.pop %v412
  %v429 = vmul.f32 %v412, %v428
  %v430 = vsub.f32 1.0, %v429
  %v431 = vmul.f32 %v428, %v430
  %v432 = vadd.f32 %v428, %v431
  %vm433 = vweird.f32 %v412
  %vm434 = vweird.f32 %v428
  %vm435 = vmor %vm433, %vm434
  %v436 = vsel %vm435, %v428, %v432
  %v437 = vand.u32 2147483647, %v412
  %vm438 = vcmp.eq.f32.partialorder %v437, 8.507059e+37
  %v439 = vand.u32 %v412, 2147483648
  %v440 = vor.u32 1.1754944e-38, %v439
  %v441 = vsel %vm438, %v440, %v436
  %v442 = vmul.f32 %v406, %v441
  %v443 = vmul.f32 %v263, %v164
  %v444 = vmul.f32 %v266, %v164
  %v446 = vsel %vm309, %v427, 0
  %v449 = vsel %vm309, %v442, 0
  %451 = vmatpush.msra.mxu0 0.0
  %452 = vmatpush.msra.mxu0 0.0
  %453 = vmatpush.msra.mxu0 0.0
  %454 = vmatpush.msra.mxu0 0.0
  %455 = vmatpush.msra.mxu0 0.0
  %456 = vmatpush.msra.mxu0 0.0
  %457 = vmatpush.msra.mxu0 0.0
  %458 = vmatpush.msra.mxu0 0.0
  %459 = vmatpush.msra.mxu0 0.0
  %460 = vmatpush.msra.mxu0 0.0
  %461 = vmatpush.msra.mxu0 0.0
  %462 = vmatpush.msra.mxu0 0.0
  %463 = vmatpush.msra.mxu0 0.0
  %464 = vmatpush.msra.mxu0 0.0
  %465 = vmatpush.msra.mxu0 %v444
  %466 = vmatpush.msra.mxu0 %v443
  %467 = vmatmul.f32.gmra.mxu0 %v446
  %v468 = vpop.f32.mrf.mxu0
  %v469 = vadd.f32 0.0, %v468
  %470 = vmatmul.f32.gmra.mxu0 %v449
  %v471 = vpop.f32.mrf.mxu0
  %v472 = vadd.f32 0.0, %v471
  %473 = vdwg.mxu0
  %v475 = vsel %vm309, %v342, 0
  %v478 = vsel %vm309, %v357, 0
  %480 = vmatpush.msra.mxu0 0.0
  %481 = vmatpush.msra.mxu0 0.0
  %482 = vmatpush.msra.mxu0 0.0
  %483 = vmatpush.msra.mxu0 0.0
  %484 = vmatpush.msra.mxu0 0.0
  %485 = vmatpush.msra.mxu0 0.0
  %486 = vmatpush.msra.mxu0 0.0
  %487 = vmatpush.msra.mxu0 0.0
  %488 = vmatpush.msra.mxu0 0.0
  %489 = vmatpush.msra.mxu0 0.0
  %490 = vmatpush.msra.mxu0 0.0
  %491 = vmatpush.msra.mxu0 0.0
  %492 = vmatpush.msra.mxu0 0.0
  %493 = vmatpush.msra.mxu0 0.0
  %494 = vmatpush.msra.mxu0 %v359
  %495 = vmatpush.msra.mxu0 %v358
  %496 = vmatmul.f32.gmra.mxu0 %v475
  %v497 = vpop.f32.mrf.mxu0
  %v498 = vadd.f32 %v469, %v497
  %499 = vmatmul.f32.gmra.mxu0 %v478
  %v500 = vpop.f32.mrf.mxu0
  %v501 = vadd.f32 %v472, %v500
  %502 = vdwg.mxu0
  %v503 = vmul.f32 %v205, %v169
  %v504 = vmul.f32 %v208, %v169
  %v506 = vsel %vm75, %v503, 0
  %v509 = vsel %vm75, %v504, 0
  %511 = vmatpush.xpose.msra.mxu0 0.0
  %512 = vmatpush.xpose.msra.mxu0 0.0
  %513 = vmatpush.xpose.msra.mxu0 0.0
  %514 = vmatpush.xpose.msra.mxu0 0.0
  %515 = vmatpush.xpose.msra.mxu0 0.0
  %516 = vmatpush.xpose.msra.mxu0 0.0
  %517 = vmatpush.xpose.msra.mxu0 0.0
  %518 = vmatpush.xpose.msra.mxu0 0.0
  %519 = vmatpush.xpose.msra.mxu0 0.0
  %520 = vmatpush.xpose.msra.mxu0 0.0
  %521 = vmatpush.xpose.msra.mxu0 0.0
  %522 = vmatpush.xpose.msra.mxu0 0.0
  %523 = vmatpush.xpose.msra.mxu0 0.0
  %524 = vmatpush.xpose.msra.mxu0 0.0
  %525 = vmatpush.xpose.msra.mxu0 %v280
  %526 = vmatpush.xpose.msra.mxu0 %v277
  %527 = vmatmul.f32.gmra.mxu0 %v506
  %v528 = vpop.f32.mrf.mxu0
  %v529 = vadd.f32 0.0, %v528
  %530 = vmatmul.f32.gmra.mxu0 %v509
  %v531 = vpop.f32.mrf.mxu0
  %v532 = vadd.f32 0.0, %v531
  %533 = vdwg.mxu0
  %v534 = vmul.f32 %v529, 0.35355338
  %v535 = vmul.f32 %v532, 0.35355338
  %v536 = vadd.f32 %v534, %v154
  %v537 = vadd.f32 %v535, %v155
  %v538 = vsel %vm309, %v536, -inf
  %539 = vmax.xlane.f32.xlu0 %v538
  %v540 = vpop.xlane.xlu0 %539
  %v541 = vsel %vm309, %v537, -inf
  %542 = vmax.xlane.f32.xlu0 %v541
  %v543 = vpop.xlane.xlu0 %542
  %v544 = vsub.f32 %v536, %v540
  %v545 = vsub.f32 %v537, %v543
  %v546 = vmul.f32 %v544, 1.442695
  %v547 = vpow.pop %v546
  %v548 = vmul.f32 %v545, 1.442695
  %v549 = vpow.pop %v548
  %v550 = vsel %vm309, %v547, 0.0
  %551 = vadd.xlane.f32.xlu0 %v550
  %v552 = vpop.xlane.xlu0 %551
  %v553 = vsel %vm309, %v549, 0.0
  %554 = vadd.xlane.f32.xlu0 %v553
  %v555 = vpop.xlane.xlu0 %554
  %v556 = vrcp.pop %v552
  %v557 = vmul.f32 %v552, %v556
  %v558 = vsub.f32 1.0, %v557
  %v559 = vmul.f32 %v556, %v558
  %v560 = vadd.f32 %v556, %v559
  %vm561 = vweird.f32 %v552
  %vm562 = vweird.f32 %v556
  %vm563 = vmor %vm561, %vm562
  %v564 = vsel %vm563, %v556, %v560
  %v565 = vand.u32 2147483647, %v552
  %vm566 = vcmp.eq.f32.partialorder %v565, 8.507059e+37
  %v567 = vand.u32 %v552, 2147483648
  %v568 = vor.u32 1.1754944e-38, %v567
  %v569 = vsel %vm566, %v568, %v564
  %v570 = vmul.f32 %v547, %v569
  %v571 = vrcp.pop %v555
  %v572 = vmul.f32 %v555, %v571
  %v573 = vsub.f32 1.0, %v572
  %v574 = vmul.f32 %v571, %v573
  %v575 = vadd.f32 %v571, %v574
  %vm576 = vweird.f32 %v555
  %vm577 = vweird.f32 %v571
  %vm578 = vmor %vm576, %vm577
  %v579 = vsel %vm578, %v571, %v575
  %v580 = vand.u32 2147483647, %v555
  %vm581 = vcmp.eq.f32.partialorder %v580, 8.507059e+37
  %v582 = vand.u32 %v555, 2147483648
  %v583 = vor.u32 1.1754944e-38, %v582
  %v584 = vsel %vm581, %v583, %v579
  %v585 = vmul.f32 %v549, %v584
  %v586 = vmul.f32 %v263, %v169
  %v587 = vmul.f32 %v266, %v169
  %v589 = vsel %vm309, %v570, 0
  %v592 = vsel %vm309, %v585, 0
  %594 = vmatpush.msra.mxu0 0.0
  %595 = vmatpush.msra.mxu0 0.0
  %596 = vmatpush.msra.mxu0 0.0
  %597 = vmatpush.msra.mxu0 0.0
  %598 = vmatpush.msra.mxu0 0.0
  %599 = vmatpush.msra.mxu0 0.0
  %600 = vmatpush.msra.mxu0 0.0
  %601 = vmatpush.msra.mxu0 0.0
  %602 = vmatpush.msra.mxu0 0.0
  %603 = vmatpush.msra.mxu0 0.0
  %604 = vmatpush.msra.mxu0 0.0
  %605 = vmatpush.msra.mxu0 0.0
  %606 = vmatpush.msra.mxu0 0.0
  %607 = vmatpush.msra.mxu0 0.0
  %608 = vmatpush.msra.mxu0 %v587
  %609 = vmatpush.msra.mxu0 %v586
  %610 = vmatmul.f32.gmra.mxu0 %v589
  %v611 = vpop.f32.mrf.mxu0
  %v612 = vadd.f32 0.0, %v611
  %613 = vmatmul.f32.gmra.mxu0 %v592
  %v614 = vpop.f32.mrf.mxu0
  %v615 = vadd.f32 0.0, %v614
  %616 = vdwg.mxu0
  %v617 = vadd.f32 %v498, %v612
  %v618 = vadd.f32 %v501, %v615
  %v619 = vmul.f32 %v205, %v174
  %v620 = vmul.f32 %v208, %v174
  %v622 = vsel %vm75, %v619, 0
  %v625 = vsel %vm75, %v620, 0
  %627 = vmatpush.xpose.msra.mxu0 0.0
  %628 = vmatpush.xpose.msra.mxu0 0.0
  %629 = vmatpush.xpose.msra.mxu0 0.0
  %630 = vmatpush.xpose.msra.mxu0 0.0
  %631 = vmatpush.xpose.msra.mxu0 0.0
  %632 = vmatpush.xpose.msra.mxu0 0.0
  %633 = vmatpush.xpose.msra.mxu0 0.0
  %634 = vmatpush.xpose.msra.mxu0 0.0
  %635 = vmatpush.xpose.msra.mxu0 0.0
  %636 = vmatpush.xpose.msra.mxu0 0.0
  %637 = vmatpush.xpose.msra.mxu0 0.0
  %638 = vmatpush.xpose.msra.mxu0 0.0
  %639 = vmatpush.xpose.msra.mxu0 0.0
  %640 = vmatpush.xpose.msra.mxu0 0.0
  %641 = vmatpush.xpose.msra.mxu0 %v280
  %642 = vmatpush.xpose.msra.mxu0 %v277
  %643 = vmatmul.f32.gmra.mxu0 %v622
  %v644 = vpop.f32.mrf.mxu0
  %v645 = vadd.f32 0.0, %v644
  %646 = vmatmul.f32.gmra.mxu0 %v625
  %v647 = vpop.f32.mrf.mxu0
  %v648 = vadd.f32 0.0, %v647
  %649 = vdwg.mxu0
  %v650 = vmul.f32 %v645, 0.35355338
  %v651 = vmul.f32 %v648, 0.35355338
  %v652 = vadd.f32 %v650, %v154
  %v653 = vadd.f32 %v651, %v155
  %v654 = vsel %vm309, %v652, -inf
  %655 = vmax.xlane.f32.xlu0 %v654
  %v656 = vpop.xlane.xlu0 %655
  %v657 = vsel %vm309, %v653, -inf
  %658 = vmax.xlane.f32.xlu0 %v657
  %v659 = vpop.xlane.xlu0 %658
  %v660 = vsub.f32 %v652, %v656
  %v661 = vsub.f32 %v653, %v659
  %v662 = vmul.f32 %v660, 1.442695
  %v663 = vpow.pop %v662
  %v664 = vmul.f32 %v661, 1.442695
  %v665 = vpow.pop %v664
  %v666 = vsel %vm309, %v663, 0.0
  %667 = vadd.xlane.f32.xlu0 %v666
  %v668 = vpop.xlane.xlu0 %667
  %v669 = vsel %vm309, %v665, 0.0
  %670 = vadd.xlane.f32.xlu0 %v669
  %v671 = vpop.xlane.xlu0 %670
  %v672 = vrcp.pop %v668
  %v673 = vmul.f32 %v668, %v672
  %v674 = vsub.f32 1.0, %v673
  %v675 = vmul.f32 %v672, %v674
  %v676 = vadd.f32 %v672, %v675
  %vm677 = vweird.f32 %v668
  %vm678 = vweird.f32 %v672
  %vm679 = vmor %vm677, %vm678
  %v680 = vsel %vm679, %v672, %v676
  %v681 = vand.u32 2147483647, %v668
  %vm682 = vcmp.eq.f32.partialorder %v681, 8.507059e+37
  %v683 = vand.u32 %v668, 2147483648
  %v684 = vor.u32 1.1754944e-38, %v683
  %v685 = vsel %vm682, %v684, %v680
  %v686 = vmul.f32 %v663, %v685
  %v687 = vrcp.pop %v671
  %v688 = vmul.f32 %v671, %v687
  %v689 = vsub.f32 1.0, %v688
  %v690 = vmul.f32 %v687, %v689
  %v691 = vadd.f32 %v687, %v690
  %vm692 = vweird.f32 %v671
  %vm693 = vweird.f32 %v687
  %vm694 = vmor %vm692, %vm693
  %v695 = vsel %vm694, %v687, %v691
  %v696 = vand.u32 2147483647, %v671
  %vm697 = vcmp.eq.f32.partialorder %v696, 8.507059e+37
  %v698 = vand.u32 %v671, 2147483648
  %v699 = vor.u32 1.1754944e-38, %v698
  %v700 = vsel %vm697, %v699, %v695
  %v701 = vmul.f32 %v665, %v700
  %v702 = vmul.f32 %v263, %v174
  %v703 = vmul.f32 %v266, %v174
  %v705 = vsel %vm309, %v686, 0
  %v708 = vsel %vm309, %v701, 0
  %710 = vmatpush.msra.mxu0 0.0
  %711 = vmatpush.msra.mxu0 0.0
  %712 = vmatpush.msra.mxu0 0.0
  %713 = vmatpush.msra.mxu0 0.0
  %714 = vmatpush.msra.mxu0 0.0
  %715 = vmatpush.msra.mxu0 0.0
  %716 = vmatpush.msra.mxu0 0.0
  %717 = vmatpush.msra.mxu0 0.0
  %718 = vmatpush.msra.mxu0 0.0
  %719 = vmatpush.msra.mxu0 0.0
  %720 = vmatpush.msra.mxu0 0.0
  %721 = vmatpush.msra.mxu0 0.0
  %722 = vmatpush.msra.mxu0 0.0
  %723 = vmatpush.msra.mxu0 0.0
  %724 = vmatpush.msra.mxu0 %v703
  %725 = vmatpush.msra.mxu0 %v702
  %726 = vmatmul.f32.gmra.mxu0 %v705
  %v727 = vpop.f32.mrf.mxu0
  %v728 = vadd.f32 0.0, %v727
  %729 = vmatmul.f32.gmra.mxu0 %v708
  %v730 = vpop.f32.mrf.mxu0
  %v731 = vadd.f32 0.0, %v730
  %732 = vdwg.mxu0
  %v733 = vadd.f32 %v617, %v728
  %v734 = vadd.f32 %v618, %v731
  %v735 = vld [vmem:[%s2 + $0xc0] sm:$0xff]
  %v736 = vld [vmem:[%s2 + $0xc8] sm:$0xff]
  %v737 = vld [vmem:[%s2 + $0xd0] sm:$0xff]
  %v738 = vld [vmem:[%s2 + $0xd8] sm:$0xff]
  %v739 = vld [vmem:[%s2 + $0xf8] sm:$0x1]
  %v740 = vperm.slane %v739, 0
  %v742 = vsel %vm75, %v733, 0
  %v745 = vsel %vm75, %v734, 0
  %747 = vmatpush.msra.mxu0 0.0
  %748 = vmatpush.msra.mxu0 0.0
  %749 = vmatpush.msra.mxu0 0.0
  %750 = vmatpush.msra.mxu0 0.0
  %751 = vmatpush.msra.mxu0 0.0
  %752 = vmatpush.msra.mxu0 0.0
  %753 = vmatpush.msra.mxu0 0.0
  %754 = vmatpush.msra.mxu0 0.0
  %755 = vmatpush.msra.mxu0 0.0
  %756 = vmatpush.msra.mxu0 0.0
  %757 = vmatpush.msra.mxu0 0.0
  %758 = vmatpush.msra.mxu0 0.0
  %759 = vmatpush.msra.mxu0 %v738
  %760 = vmatpush.msra.mxu0 %v737
  %761 = vmatpush.msra.mxu0 %v736
  %762 = vmatpush.msra.mxu0 %v735
  %763 = vmatmul.f32.gmra.mxu0 %v742
  %v764 = vpop.f32.mrf.mxu0
  %v765 = vadd.f32 %v740, %v764
  %766 = vmatmul.f32.gmra.mxu0 %v745
  %v767 = vpop.f32.mrf.mxu0
  %v768 = vadd.f32 %v740, %v767
  %769 = vdwg.mxu0
  %v770 = vadd.f32 %v765, %v135
  %v771 = vadd.f32 %v768, %v136
  %v772 = vld [vmem:[%s2 + $0x100] sm:$0x1]
  %v773 = vld [vmem:[%s2 + $0x108] sm:$0x1]
  %v774 = vsel %vm75, %v770, 0.0
  %775 = vadd.xlane.f32.xlu0 %v774
  %v776 = vpop.xlane.xlu0 %775
  %v777 = vsel %vm75, %v771, 0.0
  %778 = vadd.xlane.f32.xlu0 %v777
  %v779 = vpop.xlane.xlu0 %778
  %v780 = vmul.f32 %v776, %v88
  %v781 = vmul.f32 %v779, %v88
  %v782 = vmul.f32 %v770, %v770
  %v783 = vmul.f32 %v771, %v771
  %v784 = vsel %vm75, %v782, 0.0
  %785 = vadd.xlane.f32.xlu0 %v784
  %v786 = vpop.xlane.xlu0 %785
  %v787 = vsel %vm75, %v783, 0.0
  %788 = vadd.xlane.f32.xlu0 %v787
  %v789 = vpop.xlane.xlu0 %788
  %v790 = vmul.f32 %v786, %v88
  %v791 = vmul.f32 %v789, %v88
  %v792 = vmul.f32 %v780, %v780
  %v793 = vmul.f32 %v781, %v781
  %v794 = vsub.f32 %v790, %v792
  %v795 = vsub.f32 %v791, %v793
  %v796 = vsub.f32 %v770, %v780
  %v797 = vsub.f32 %v771, %v781
  %v798 = vadd.f32 %v794, 1e-12
  %v799 = vadd.f32 %v795, 1e-12
  %v800 = vrsqrt.pop %v798
  %v801 = vmul.f32 %v800, %v798
  %v802 = vmul.f32 %v801, %v800
  %v803 = vmul.f32 0.5, %v802
  %v804 = vsub.f32 1.5, %v803
  %v805 = vmul.f32 %v800, %v804
  %vm806 = vweird.f32 %v798
  %vm807 = vweird.f32 %v800
  %vm808 = vmor %vm806, %vm807
  %v809 = vsel %vm808, %v800, %v805
  %v810 = vrsqrt.pop %v799
  %v811 = vmul.f32 %v810, %v799
  %v812 = vmul.f32 %v811, %v810
  %v813 = vmul.f32 0.5, %v812
  %v814 = vsub.f32 1.5, %v813
  %v815 = vmul.f32 %v810, %v814
  %vm816 = vweird.f32 %v799
  %vm817 = vweird.f32 %v810
  %vm818 = vmor %vm816, %vm817
  %v819 = vsel %vm818, %v810, %v815
  %v820 = vmul.f32 %v796, %v809
  %v821 = vmul.f32 %v797, %v819
  %v822 = vperm.slane %v772, 0
  %v823 = vmul.f32 %v820, %v822
  %v824 = vmul.f32 %v821, %v822
  %v825 = vperm.slane %v773, 0
  %v826 = vadd.f32 %v823, %v825
  %v827 = vadd.f32 %v824, %v825
  %v828 = vld [vmem:[%s3] sm:$0xff]
  %v829 = vld [vmem:[%s3 + $0x8] sm:$0xff]
  %v830 = vld [vmem:[%s3 + $0x10] sm:$0xff]
  %v831 = vld [vmem:[%s3 + $0x18] sm:$0xff]
  %v832 = vld [vmem:[%s3 + $0x20] sm:$0x1]
  %v833 = vperm.slane %v832, 0
  %v835 = vsel %vm75, %v826, 0
  %v838 = vsel %vm75, %v827, 0
  %840 = vmatpush.msra.mxu0 0.0
  %841 = vmatpush.msra.mxu0 0.0
  %842 = vmatpush.msra.mxu0 0.0
  %843 = vmatpush.msra.mxu0 0.0
  %844 = vmatpush.msra.mxu0 0.0
  %845 = vmatpush.msra.mxu0 0.0
  %846 = vmatpush.msra.mxu0 0.0
  %847 = vmatpush.msra.mxu0 0.0
  %848 = vmatpush.msra.mxu0 0.0
  %849 = vmatpush.msra.mxu0 0.0
  %850 = vmatpush.msra.mxu0 0.0
  %851 = vmatpush.msra.mxu0 0.0
  %852 = vmatpush.msra.mxu0 %v831
  %853 = vmatpush.msra.mxu0 %v830
  %854 = vmatpush.msra.mxu0 %v829
  %855 = vmatpush.msra.mxu0 %v828
  %856 = vmatmul.f32.gmra.mxu0 %v835
  %v857 = vpop.f32.mrf.mxu0
  %v858 = vadd.f32 %v833, %v857
  %859 = vmatmul.f32.gmra.mxu0 %v838
  %v860 = vpop.f32.mrf.mxu0
  %v861 = vadd.f32 %v833, %v860
  %862 = vdwg.mxu0
  %v863 = vmul.f32 %v858, %v858
  %v864 = vmul.f32 %v861, %v861
  %v865 = vmul.f32 %v858, %v863
  %v866 = vmul.f32 %v861, %v864
  %v867 = vmul.f32 %v865, 0.044715
  %v868 = vmul.f32 %v866, 0.044715
  %v869 = vadd.f32 %v858, %v867
  %v870 = vadd.f32 %v861, %v868
  %v871 = vmul.f32 %v869, 0.7978846
  %v872 = vmul.f32 %v870, 0.7978846
  %v873 = vtanh.pop %v871
  %v874 = vtanh.pop %v872
  %v875 = vadd.f32 %v873, 1.0
  %v876 = vadd.f32 %v874, 1.0
  %v877 = vmul.f32 %v875, 0.5
  %v878 = vmul.f32 %v876, 0.5
  %v879 = vmul.f32 %v858, %v877
  %v880 = vmul.f32 %v861, %v878
  %v881 = vld [vmem:[%s2 + $0x110] sm:$0xff]
  %v882 = vld [vmem:[%s2 + $0x118] sm:$0xff]
  %v883 = vld [vmem:[%s2 + $0x120] sm:$0xff]
  %v884 = vld [vmem:[%s2 + $0x128] sm:$0xff]
  %v885 = vld [vmem:[%s2 + $0x130] sm:$0xff]
  %v886 = vld [vmem:[%s2 + $0x138] sm:$0xff]
  %v887 = vld [vmem:[%s2 + $0x140] sm:$0xff]
  %v888 = vld [vmem:[%s2 + $0x148] sm:$0xff]
  %v889 = vld [vmem:[%s2 + $0x150] sm:$0xff]
  %v890 = vld [vmem:[%s2 + $0x158] sm:$0xff]
  %v891 = vld [vmem:[%s2 + $0x160] sm:$0xff]
  %v892 = vld [vmem:[%s2 + $0x168] sm:$0xff]
  %v893 = vld [vmem:[%s2 + $0x170] sm:$0xff]
  %v894 = vld [vmem:[%s2 + $0x178] sm:$0xff]
  %v895 = vld [vmem:[%s2 + $0x180] sm:$0xff]
  %v896 = vld [vmem:[%s2 + $0x188] sm:$0xff]
  %v897 = vld [vmem:[%s2 + $0x190] sm:$0x1]
  %v898 = vperm.slane %v897, 0
  %899 = vmatpush.msra.mxu0 %v896
  %900 = vmatpush.msra.mxu0 %v895
  %901 = vmatpush.msra.mxu0 %v894
  %902 = vmatpush.msra.mxu0 %v893
  %903 = vmatpush.msra.mxu0 %v892
  %904 = vmatpush.msra.mxu0 %v891
  %905 = vmatpush.msra.mxu0 %v890
  %906 = vmatpush.msra.mxu0 %v889
  %907 = vmatpush.msra.mxu0 %v888
  %908 = vmatpush.msra.mxu0 %v887
  %909 = vmatpush.msra.mxu0 %v886
  %910 = vmatpush.msra.mxu0 %v885
  %911 = vmatpush.msra.mxu0 %v884
  %912 = vmatpush.msra.mxu0 %v883
  %913 = vmatpush.msra.mxu0 %v882
  %914 = vmatpush.msra.mxu0 %v881
  %915 = vmatmul.f32.gmra.mxu0 %v879
  %v916 = vpop.f32.mrf.mxu0
  %v917 = vadd.f32 %v898, %v916
  %918 = vmatmul.f32.gmra.mxu0 %v880
  %v919 = vpop.f32.mrf.mxu0
  %v920 = vadd.f32 %v898, %v919
  %921 = vdwg.mxu0
  %v922 = vadd.f32 %v917, %v826
  %v923 = vadd.f32 %v920, %v827
  %v924 = vld [vmem:[%s2 + $0x198] sm:$0x1]
  %v925 = vld [vmem:[%s2 + $0x1a0] sm:$0x1]
  %v926 = vsel %vm75, %v922, 0.0
  %927 = vadd.xlane.f32.xlu0 %v926
  %v928 = vpop.xlane.xlu0 %927
  %v929 = vsel %vm75, %v923, 0.0
  %930 = vadd.xlane.f32.xlu0 %v929
  %v931 = vpop.xlane.xlu0 %930
  %v932 = vmul.f32 %v928, %v88
  %v933 = vmul.f32 %v931, %v88
  %v934 = vmul.f32 %v922, %v922
  %v935 = vmul.f32 %v923, %v923
  %v936 = vsel %vm75, %v934, 0.0
  %937 = vadd.xlane.f32.xlu0 %v936
  %v938 = vpop.xlane.xlu0 %937
  %v939 = vsel %vm75, %v935, 0.0
  %940 = vadd.xlane.f32.xlu0 %v939
  %v941 = vpop.xlane.xlu0 %940
  %v942 = vmul.f32 %v938, %v88
  %v943 = vmul.f32 %v941, %v88
  %v944 = vmul.f32 %v932, %v932
  %v945 = vmul.f32 %v933, %v933
  %v946 = vsub.f32 %v942, %v944
  %v947 = vsub.f32 %v943, %v945
  %v948 = vsub.f32 %v922, %v932
  %v949 = vsub.f32 %v923, %v933
  %v950 = vadd.f32 %v946, 1e-12
  %v951 = vadd.f32 %v947, 1e-12
  %v952 = vrsqrt.pop %v950
  %v953 = vmul.f32 %v952, %v950
  %v954 = vmul.f32 %v953, %v952
  %v955 = vmul.f32 0.5, %v954
  %v956 = vsub.f32 1.5, %v955
  %v957 = vmul.f32 %v952, %v956
  %vm958 = vweird.f32 %v950
  %vm959 = vweird.f32 %v952
  %vm960 = vmor %vm958, %vm959
  %v961 = vsel %vm960, %v952, %v957
  %v962 = vrsqrt.pop %v951
  %v963 = vmul.f32 %v962, %v951
  %v964 = vmul.f32 %v963, %v962
  %v965 = vmul.f32 0.5, %v964
  %v966 = vsub.f32 1.5, %v965
  %v967 = vmul.f32 %v962, %v966
  %vm968 = vweird.f32 %v951
  %vm969 = vweird.f32 %v962
  %vm970 = vmor %vm968, %vm969
  %v971 = vsel %vm970, %v962, %v967
  %v972 = vmul.f32 %v948, %v961
  %v973 = vmul.f32 %v949, %v971
  %v974 = vperm.slane %v924, 0
  %v975 = vmul.f32 %v972, %v974
  %v976 = vmul.f32 %v973, %v974
  %v977 = vperm.slane %v925, 0
  %v978 = vadd.f32 %v975, %v977
  %v979 = vadd.f32 %v976, %v977
  %v980 = vld [vmem:[%s2 + $0x1a8] sm:$0xff]
  %v981 = vld [vmem:[%s2 + $0x1b0] sm:$0xff]
  %v982 = vld [vmem:[%s2 + $0x1b8] sm:$0xff]
  %v983 = vld [vmem:[%s2 + $0x1c0] sm:$0xff]
  %v984 = vld [vmem:[%s2 + $0x228] sm:$0x1]
  %v985 = vperm.slane %v984, 0
  %v987 = vsel %vm75, %v978, 0
  %v990 = vsel %vm75, %v979, 0
  %992 = vmatpush.msra.mxu0 0.0
  %993 = vmatpush.msra.mxu0 0.0
  %994 = vmatpush.msra.mxu0 0.0
  %995 = vmatpush.msra.mxu0 0.0
  %996 = vmatpush.msra.mxu0 0.0
  %997 = vmatpush.msra.mxu0 0.0
  %998 = vmatpush.msra.mxu0 0.0
  %999 = vmatpush.msra.mxu0 0.0
  %1000 = vmatpush.msra.mxu0 0.0
  %1001 = vmatpush.msra.mxu0 0.0
  %1002 = vmatpush.msra.mxu0 0.0
  %1003 = vmatpush.msra.mxu0 0.0
  %1004 = vmatpush.msra.mxu0 %v983
  %1005 = vmatpush.msra.mxu0 %v982
  %1006 = vmatpush.msra.mxu0 %v981
  %1007 = vmatpush.msra.mxu0 %v980
  %1008 = vmatmul.f32.gmra.mxu0 %v987
  %v1009 = vpop.f32.mrf.mxu0
  %v1010 = vadd.f32 %v985, %v1009
  %1011 = vmatmul.f32.gmra.mxu0 %v990
  %v1012 = vpop.f32.mrf.mxu0
  %v1013 = vadd.f32 %v985, %v1012
  %1014 = vdwg.mxu0
  %v1015 = vld [vmem:[%s2 + $0x1c8] sm:$0xff]
  %v1016 = vld [vmem:[%s2 + $0x1d0] sm:$0xff]
  %v1017 = vld [vmem:[%s2 + $0x1d8] sm:$0xff]
  %v1018 = vld [vmem:[%s2 + $0x1e0] sm:$0xff]
  %v1019 = vld [vmem:[%s2 + $0x230] sm:$0x1]
  %v1020 = vperm.slane %v1019, 0
  %1021 = vmatpush.msra.mxu0 0.0
  %1022 = vmatpush.msra.mxu0 0.0
  %1023 = vmatpush.msra.mxu0 0.0
  %1024 = vmatpush.msra.mxu0 0.0
  %1025 = vmatpush.msra.mxu0 0.0
  %1026 = vmatpush.msra.mxu0 0.0
  %1027 = vmatpush.msra.mxu0 0.0
  %1028 = vmatpush.msra.mxu0 0.0
  %1029 = vmatpush.msra.mxu0 0.0
  %1030 = vmatpush.msra.mxu0 0.0
  %1031 = vmatpush.msra.mxu0 0.0
  %1032 = vmatpush.msra.mxu0 0.0
  %1033 = vmatpush.msra.mxu0 %v1018
  %1034 = vmatpush.msra.mxu0 %v1017
  %1035 = vmatpush.msra.mxu0 %v1016
  %1036 = vmatpush.msra.mxu0 %v1015
  %1037 = vmatmul.f32.gmra.mxu0 %v987
  %v1038 = vpop.f32.mrf.mxu0
  %v1039 = vadd.f32 %v1020, %v1038
  %1040 = vmatmul.f32.gmra.mxu0 %v990
  %v1041 = vpop.f32.mrf.mxu0
  %v1042 = vadd.f32 %v1020, %v1041
  %1043 = vdwg.mxu0
  %v1044 = vld [vmem:[%s2 + $0x1e8] sm:$0xff]
  %v1045 = vld [vmem:[%s2 + $0x1f0] sm:$0xff]
  %v1046 = vld [vmem:[%s2 + $0x1f8] sm:$0xff]
  %v1047 = vld [vmem:[%s2 + $0x200] sm:$0xff]
  %v1048 = vld [vmem:[%s2 + $0x238] sm:$0x1]
  %v1049 = vperm.slane %v1048, 0
  %1050 = vmatpush.msra.mxu0 0.0
  %1051 = vmatpush.msra.mxu0 0.0
  %1052 = vmatpush.msra.mxu0 0.0
  %1053 = vmatpush.msra.mxu0 0.0
  %1054 = vmatpush.msra.mxu0 0.0
  %1055 = vmatpush.msra.mxu0 0.0
  %1056 = vmatpush.msra.mxu0 0.0
  %1057 = vmatpush.msra.mxu0 0.0
  %1058 = vmatpush.msra.mxu0 0.0
  %1059 = vmatpush.msra.mxu0 0.0
  %1060 = vmatpush.msra.mxu0 0.0
  %1061 = vmatpush.msra.mxu0 0.0
  %1062 = vmatpush.msra.mxu0 %v1047
  %1063 = vmatpush.msra.mxu0 %v1046
  %1064 = vmatpush.msra.mxu0 %v1045
  %1065 = vmatpush.msra.mxu0 %v1044
  %1066 = vmatmul.f32.gmra.mxu0 %v987
  %v1067 = vpop.f32.mrf.mxu0
  %v1068 = vadd.f32 %v1049, %v1067
  %1069 = vmatmul.f32.gmra.mxu0 %v990
  %v1070 = vpop.f32.mrf.mxu0
  %v1071 = vadd.f32 %v1049, %v1070
  %1072 = vdwg.mxu0
  %v1073 = vmul.f32 %v1010, %v160
  %v1074 = vmul.f32 %v1013, %v160
  %v1076 = vsel %vm75, %v1073, 0
  %v1079 = vsel %vm75, %v1074, 0
  %v1082 = vsel %vm75, %v1039, 0
  %v1085 = vsel %vm75, %v1042, 0
  %1087 = vmatpush.xpose.msra.mxu0 0.0
  %1088 = vmatpush.xpose.msra.mxu0 0.0
  %1089 = vmatpush.xpose.msra.mxu0 0.0
  %1090 = vmatpush.xpose.msra.mxu0 0.0
  %1091 = vmatpush.xpose.msra.mxu0 0.0
  %1092 = vmatpush.xpose.msra.mxu0 0.0
  %1093 = vmatpush.xpose.msra.mxu0 0.0
  %1094 = vmatpush.xpose.msra.mxu0 0.0
  %1095 = vmatpush.xpose.msra.mxu0 0.0
  %1096 = vmatpush.xpose.msra.mxu0 0.0
  %1097 = vmatpush.xpose.msra.mxu0 0.0
  %1098 = vmatpush.xpose.msra.mxu0 0.0
  %1099 = vmatpush.xpose.msra.mxu0 0.0
  %1100 = vmatpush.xpose.msra.mxu0 0.0
  %1101 = vmatpush.xpose.msra.mxu0 %v1085
  %1102 = vmatpush.xpose.msra.mxu0 %v1082
  %1103 = vmatmul.f32.gmra.mxu0 %v1076
  %v1104 = vpop.f32.mrf.mxu0
  %v1105 = vadd.f32 0.0, %v1104
  %1106 = vmatmul.f32.gmra.mxu0 %v1079
  %v1107 = vpop.f32.mrf.mxu0
  %v1108 = vadd.f32 0.0, %v1107
  %1109 = vdwg.mxu0
  %v1110 = vmul.f32 %v1105, 0.35355338
  %v1111 = vmul.f32 %v1108, 0.35355338
  %v1112 = vadd.f32 %v1110, %v154
  %v1113 = vadd.f32 %v1111, %v155
  %v1114 = vsel %vm309, %v1112, -inf
  %1115 = vmax.xlane.f32.xlu0 %v1114
  %v1116 = vpop.xlane.xlu0 %1115
  %v1117 = vsel %vm309, %v1113, -inf
  %1118 = vmax.xlane.f32.xlu0 %v1117
  %v1119 = vpop.xlane.xlu0 %1118
  %v1120 = vsub.f32 %v1112, %v1116
  %v1121 = vsub.f32 %v1113, %v1119
  %v1122 = vmul.f32 %v1120, 1.442695
  %v1123 = vpow.pop %v1122
  %v1124 = vmul.f32 %v1121, 1.442695
  %v1125 = vpow.pop %v1124
  %v1126 = vsel %vm309, %v1123, 0.0
  %1127 = vadd.xlane.f32.xlu0 %v1126
  %v1128 = vpop.xlane.xlu0 %1127
  %v1129 = vsel %vm309, %v1125, 0.0
  %1130 = vadd.xlane.f32.xlu0 %v1129
  %v1131 = vpop.xlane.xlu0 %1130
  %v1132 = vrcp.pop %v1128
  %v1133 = vmul.f32 %v1128, %v1132
  %v1134 = vsub.f32 1.0, %v1133
  %v1135 = vmul.f32 %v1132, %v1134
  %v1136 = vadd.f32 %v1132, %v1135
  %vm1137 = vweird.f32 %v1128
  %vm1138 = vweird.f32 %v1132
  %vm1139 = vmor %vm1137, %vm1138
  %v1140 = vsel %vm1139, %v1132, %v1136
  %v1141 = vand.u32 2147483647, %v1128
  %vm1142 = vcmp.eq.f32.partialorder %v1141, 8.507059e+37
  %v1143 = vand.u32 %v1128, 2147483648
  %v1144 = vor.u32 1.1754944e-38, %v1143
  %v1145 = vsel %vm1142, %v1144, %v1140
  %v1146 = vmul.f32 %v1123, %v1145
  %v1147 = vrcp.pop %v1131
  %v1148 = vmul.f32 %v1131, %v1147
  %v1149 = vsub.f32 1.0, %v1148
  %v1150 = vmul.f32 %v1147, %v1149
  %v1151 = vadd.f32 %v1147, %v1150
  %vm1152 = vweird.f32 %v1131
  %vm1153 = vweird.f32 %v1147
  %vm1154 = vmor %vm1152, %vm1153
  %v1155 = vsel %vm1154, %v1147, %v1151
  %v1156 = vand.u32 2147483647, %v1131
  %vm1157 = vcmp.eq.f32.partialorder %v1156, 8.507059e+37
  %v1158 = vand.u32 %v1131, 2147483648
  %v1159 = vor.u32 1.1754944e-38, %v1158
  %v1160 = vsel %vm1157, %v1159, %v1155
  %v1161 = vmul.f32 %v1125, %v1160
  %v1162 = vmul.f32 %v1068, %v160
  %v1163 = vmul.f32 %v1071, %v160
  %v1164 = vmul.f32 %v1010, %v164
  %v1165 = vmul.f32 %v1013, %v164
  %v1167 = vsel %vm75, %v1164, 0
  %v1170 = vsel %vm75, %v1165, 0
  %1172 = vmatpush.xpose.msra.mxu0 0.0
  %1173 = vmatpush.xpose.msra.mxu0 0.0
  %1174 = vmatpush.xpose.msra.mxu0 0.0
  %1175 = vmatpush.xpose.msra.mxu0 0.0
  %1176 = vmatpush.xpose.msra.mxu0 0.0
  %1177 = vmatpush.xpose.msra.mxu0 0.0
  %1178 = vmatpush.xpose.msra.mxu0 0.0
  %1179 = vmatpush.xpose.msra.mxu0 0.0
  %1180 = vmatpush.xpose.msra.mxu0 0.0
  %1181 = vmatpush.xpose.msra.mxu0 0.0
  %1182 = vmatpush.xpose.msra.mxu0 0.0
  %1183 = vmatpush.xpose.msra.mxu0 0.0
  %1184 = vmatpush.xpose.msra.mxu0 0.0
  %1185 = vmatpush.xpose.msra.mxu0 0.0
  %1186 = vmatpush.xpose.msra.mxu0 %v1085
  %1187 = vmatpush.xpose.msra.mxu0 %v1082
  %1188 = vmatmul.f32.gmra.mxu0 %v1167
  %v1189 = vpop.f32.mrf.mxu0
  %v1190 = vadd.f32 0.0, %v1189
  %1191 = vmatmul.f32.gmra.mxu0 %v1170
  %v1192 = vpop.f32.mrf.mxu0
  %v1193 = vadd.f32 0.0, %v1192
  %1194 = vdwg.mxu0
  %v1195 = vmul.f32 %v1190, 0.35355338
  %v1196 = vmul.f32 %v1193, 0.35355338
  %v1197 = vadd.f32 %v1195, %v154
  %v1198 = vadd.f32 %v1196, %v155
  %v1199 = vsel %vm309, %v1197, -inf
  %1200 = vmax.xlane.f32.xlu0 %v1199
  %v1201 = vpop.xlane.xlu0 %1200
  %v1202 = vsel %vm309, %v1198, -inf
  %1203 = vmax.xlane.f32.xlu0 %v1202
  %v1204 = vpop.xlane.xlu0 %1203
  %v1205 = vsub.f32 %v1197, %v1201
  %v1206 = vsub.f32 %v1198, %v1204
  %v1207 = vmul.f32 %v1205, 1.442695
  %v1208 = vpow.pop %v1207
  %v1209 = vmul.f32 %v1206, 1.442695
  %v1210 = vpow.pop %v1209
  %v1211 = vsel %vm309, %v1208, 0.0
  %1212 = vadd.xlane.f32.xlu0 %v1211
  %v1213 = vpop.xlane.xlu0 %1212
  %v1214 = vsel %vm309, %v1210, 0.0
  %1215 = vadd.xlane.f32.xlu0 %v1214
  %v1216 = vpop.xlane.xlu0 %1215
  %v1217 = vrcp.pop %v1213
  %v1218 = vmul.f32 %v1213, %v1217
  %v1219 = vsub.f32 1.0, %v1218
  %v1220 = vmul.f32 %v1217, %v1219
  %v1221 = vadd.f32 %v1217, %v1220
  %vm1222 = vweird.f32 %v1213
  %vm1223 = vweird.f32 %v1217
  %vm1224 = vmor %vm1222, %vm1223
  %v1225 = vsel %vm1224, %v1217, %v1221
  %v1226 = vand.u32 2147483647, %v1213
  %vm1227 = vcmp.eq.f32.partialorder %v1226, 8.507059e+37
  %v1228 = vand.u32 %v1213, 2147483648
  %v1229 = vor.u32 1.1754944e-38, %v1228
  %v1230 = vsel %vm1227, %v1229, %v1225
  %v1231 = vmul.f32 %v1208, %v1230
  %v1232 = vrcp.pop %v1216
  %v1233 = vmul.f32 %v1216, %v1232
  %v1234 = vsub.f32 1.0, %v1233
  %v1235 = vmul.f32 %v1232, %v1234
  %v1236 = vadd.f32 %v1232, %v1235
  %vm1237 = vweird.f32 %v1216
  %vm1238 = vweird.f32 %v1232
  %vm1239 = vmor %vm1237, %vm1238
  %v1240 = vsel %vm1239, %v1232, %v1236
  %v1241 = vand.u32 2147483647, %v1216
  %vm1242 = vcmp.eq.f32.partialorder %v1241, 8.507059e+37
  %v1243 = vand.u32 %v1216, 2147483648
  %v1244 = vor.u32 1.1754944e-38, %v1243
  %v1245 = vsel %vm1242, %v1244, %v1240
  %v1246 = vmul.f32 %v1210, %v1245
  %v1247 = vmul.f32 %v1068, %v164
  %v1248 = vmul.f32 %v1071, %v164
  %v1250 = vsel %vm309, %v1231, 0
  %v1253 = vsel %vm309, %v1246, 0
  %1255 = vmatpush.msra.mxu0 0.0
  %1256 = vmatpush.msra.mxu0 0.0
  %1257 = vmatpush.msra.mxu0 0.0
  %1258 = vmatpush.msra.mxu0 0.0
  %1259 = vmatpush.msra.mxu0 0.0
  %1260 = vmatpush.msra.mxu0 0.0
  %1261 = vmatpush.msra.mxu0 0.0
  %1262 = vmatpush.msra.mxu0 0.0
  %1263 = vmatpush.msra.mxu0 0.0
  %1264 = vmatpush.msra.mxu0 0.0
  %1265 = vmatpush.msra.mxu0 0.0
  %1266 = vmatpush.msra.mxu0 0.0
  %1267 = vmatpush.msra.mxu0 0.0
  %1268 = vmatpush.msra.mxu0 0.0
  %1269 = vmatpush.msra.mxu0 %v1248
  %1270 = vmatpush.msra.mxu0 %v1247
  %1271 = vmatmul.f32.gmra.mxu0 %v1250
  %v1272 = vpop.f32.mrf.mxu0
  %v1273 = vadd.f32 0.0, %v1272
  %1274 = vmatmul.f32.gmra.mxu0 %v1253
  %v1275 = vpop.f32.mrf.mxu0
  %v1276 = vadd.f32 0.0, %v1275
  %1277 = vdwg.mxu0
  %v1279 = vsel %vm309, %v1146, 0
  %v1282 = vsel %vm309, %v1161, 0
  %1284 = vmatpush.msra.mxu0 0.0
  %1285 = vmatpush.msra.mxu0 0.0
  %1286 = vmatpush.msra.mxu0 0.0
  %1287 = vmatpush.msra.mxu0 0.0
  %1288 = vmatpush.msra.mxu0 0.0
  %1289 = vmatpush.msra.mxu0 0.0
  %1290 = vmatpush.msra.mxu0 0.0
  %1291 = vmatpush.msra.mxu0 0.0
  %1292 = vmatpush.msra.mxu0 0.0
  %1293 = vmatpush.msra.mxu0 0.0
  %1294 = vmatpush.msra.mxu0 0.0
  %1295 = vmatpush.msra.mxu0 0.0
  %1296 = vmatpush.msra.mxu0 0.0
  %1297 = vmatpush.msra.mxu0 0.0
  %1298 = vmatpush.msra.mxu0 %v1163
  %1299 = vmatpush.msra.mxu0 %v1162
  %1300 = vmatmul.f32.gmra.mxu0 %v1279
  %v1301 = vpop.f32.mrf.mxu0
  %v1302 = vadd.f32 %v1273, %v1301
  %1303 = vmatmul.f32.gmra.mxu0 %v1282
  %v1304 = vpop.f32.mrf.mxu0
  %v1305 = vadd.f32 %v1276, %v1304
  %1306 = vdwg.mxu0
  %v1307 = vmul.f32 %v1010, %v169
  %v1308 = vmul.f32 %v1013, %v169
  %v1310 = vsel %vm75, %v1307, 0
  %v1313 = vsel %vm75, %v1308, 0
  %1315 = vmatpush.xpose.msra.mxu0 0.0
  %1316 = vmatpush.xpose.msra.mxu0 0.0
  %1317 = vmatpush.xpose.msra.mxu0 0.0
  %1318 = vmatpush.xpose.msra.mxu0 0.0
  %1319 = vmatpush.xpose.msra.mxu0 0.0
  %1320 = vmatpush.xpose.msra.mxu0 0.0
  %1321 = vmatpush.xpose.msra.mxu0 0.0
  %1322 = vmatpush.xpose.msra.mxu0 0.0
  %1323 = vmatpush.xpose.msra.mxu0 0.0
  %1324 = vmatpush.xpose.msra.mxu0 0.0
  %1325 = vmatpush.xpose.msra.mxu0 0.0
  %1326 = vmatpush.xpose.msra.mxu0 0.0
  %1327 = vmatpush.xpose.msra.mxu0 0.0
  %1328 = vmatpush.xpose.msra.mxu0 0.0
  %1329 = vmatpush.xpose.msra.mxu0 %v1085
  %1330 = vmatpush.xpose.msra.mxu0 %v1082
  %1331 = vmatmul.f32.gmra.mxu0 %v1310
  %v1332 = vpop.f32.mrf.mxu0
  %v1333 = vadd.f32 0.0, %v1332
  %1334 = vmatmul.f32.gmra.mxu0 %v1313
  %v1335 = vpop.f32.mrf.mxu0
  %v1336 = vadd.f32 0.0, %v1335
  %1337 = vdwg.mxu0
  %v1338 = vmul.f32 %v1333, 0.35355338
  %v1339 = vmul.f32 %v1336, 0.35355338
  %v1340 = vadd.f32 %v1338, %v154
  %v1341 = vadd.f32 %v1339, %v155
  %v1342 = vsel %vm309, %v1340, -inf
  %1343 = vmax.xlane.f32.xlu0 %v1342
  %v1344 = vpop.xlane.xlu0 %1343
  %v1345 = vsel %vm309, %v1341, -inf
  %1346 = vmax.xlane.f32.xlu0 %v1345
  %v1347 = vpop.xlane.xlu0 %1346
  %v1348 = vsub.f32 %v1340, %v1344
  %v1349 = vsub.f32 %v1341, %v1347
  %v1350 = vmul.f32 %v1348, 1.442695
  %v1351 = vpow.pop %v1350
  %v1352 = vmul.f32 %v1349, 1.442695
  %v1353 = vpow.pop %v1352
  %v1354 = vsel %vm309, %v1351, 0.0
  %1355 = vadd.xlane.f32.xlu0 %v1354
  %v1356 = vpop.xlane.xlu0 %1355
  %v1357 = vsel %vm309, %v1353, 0.0
  %1358 = vadd.xlane.f32.xlu0 %v1357
  %v1359 = vpop.xlane.xlu0 %1358
  %v1360 = vrcp.pop %v1356
  %v1361 = vmul.f32 %v1356, %v1360
  %v1362 = vsub.f32 1.0, %v1361
  %v1363 = vmul.f32 %v1360, %v1362
  %v1364 = vadd.f32 %v1360, %v1363
  %vm1365 = vweird.f32 %v1356
  %vm1366 = vweird.f32 %v1360
  %vm1367 = vmor %vm1365, %vm1366
  %v1368 = vsel %vm1367, %v1360, %v1364
  %v1369 = vand.u32 2147483647, %v1356
  %vm1370 = vcmp.eq.f32.partialorder %v1369, 8.507059e+37
  %v1371 = vand.u32 %v1356, 2147483648
  %v1372 = vor.u32 1.1754944e-38, %v1371
  %v1373 = vsel %vm1370, %v1372, %v1368
  %v1374 = vmul.f32 %v1351, %v1373
  %v1375 = vrcp.pop %v1359
  %v1376 = vmul.f32 %v1359, %v1375
  %v1377 = vsub.f32 1.0, %v1376
  %v1378 = vmul.f32 %v1375, %v1377
  %v1379 = vadd.f32 %v1375, %v1378
  %vm1380 = vweird.f32 %v1359
  %vm1381 = vweird.f32 %v1375
  %vm1382 = vmor %vm1380, %vm1381
  %v1383 = vsel %vm1382, %v1375, %v1379
  %v1384 = vand.u32 2147483647, %v1359
  %vm1385 = vcmp.eq.f32.partialorder %v1384, 8.507059e+37
  %v1386 = vand.u32 %v1359, 2147483648
  %v1387 = vor.u32 1.1754944e-38, %v1386
  %v1388 = vsel %vm1385, %v1387, %v1383
  %v1389 = vmul.f32 %v1353, %v1388
  %v1390 = vmul.f32 %v1068, %v169
  %v1391 = vmul.f32 %v1071, %v169
  %v1393 = vsel %vm309, %v1374, 0
  %v1396 = vsel %vm309, %v1389, 0
  %1398 = vmatpush.msra.mxu0 0.0
  %1399 = vmatpush.msra.mxu0 0.0
  %1400 = vmatpush.msra.mxu0 0.0
  %1401 = vmatpush.msra.mxu0 0.0
  %1402 = vmatpush.msra.mxu0 0.0
  %1403 = vmatpush.msra.mxu0 0.0
  %1404 = vmatpush.msra.mxu0 0.0
  %1405 = vmatpush.msra.mxu0 0.0
  %1406 = vmatpush.msra.mxu0 0.0
  %1407 = vmatpush.msra.mxu0 0.0
  %1408 = vmatpush.msra.mxu0 0.0
  %1409 = vmatpush.msra.mxu0 0.0
  %1410 = vmatpush.msra.mxu0 0.0
  %1411 = vmatpush.msra.mxu0 0.0
  %1412 = vmatpush.msra.mxu0 %v1391
  %1413 = vmatpush.msra.mxu0 %v1390
  %1414 = vmatmul.f32.gmra.mxu0 %v1393
  %v1415 = vpop.f32.mrf.mxu0
  %v1416 = vadd.f32 0.0, %v1415
  %1417 = vmatmul.f32.gmra.mxu0 %v1396
  %v1418 = vpop.f32.mrf.mxu0
  %v1419 = vadd.f32 0.0, %v1418
  %1420 = vdwg.mxu0
  %v1421 = vadd.f32 %v1302, %v1416
  %v1422 = vadd.f32 %v1305, %v1419
  %v1423 = vmul.f32 %v1010, %v174
  %v1424 = vmul.f32 %v1013, %v174
  %v1426 = vsel %vm75, %v1423, 0
  %v1429 = vsel %vm75, %v1424, 0
  %1431 = vmatpush.xpose.msra.mxu0 0.0
  %1432 = vmatpush.xpose.msra.mxu0 0.0
  %1433 = vmatpush.xpose.msra.mxu0 0.0
  %1434 = vmatpush.xpose.msra.mxu0 0.0
  %1435 = vmatpush.xpose.msra.mxu0 0.0
  %1436 = vmatpush.xpose.msra.mxu0 0.0
  %1437 = vmatpush.xpose.msra.mxu0 0.0
  %1438 = vmatpush.xpose.msra.mxu0 0.0
  %1439 = vmatpush.xpose.msra.mxu0 0.0
  %1440 = vmatpush.xpose.msra.mxu0 0.0
  %1441 = vmatpush.xpose.msra.mxu0 0.0
  %1442 = vmatpush.xpose.msra.mxu0 0.0
  %1443 = vmatpush.xpose.msra.mxu0 0.0
  %1444 = vmatpush.xpose.msra.mxu0 0.0
  %1445 = vmatpush.xpose.msra.mxu0 %v1085
  %1446 = vmatpush.xpose.msra.mxu0 %v1082
  %1447 = vmatmul.f32.gmra.mxu0 %v1426
  %v1448 = vpop.f32.mrf.mxu0
  %v1449 = vadd.f32 0.0, %v1448
  %1450 = vmatmul.f32.gmra.mxu0 %v1429
  %v1451 = vpop.f32.mrf.mxu0
  %v1452 = vadd.f32 0.0, %v1451
  %1453 = vdwg.mxu0
  %v1454 = vmul.f32 %v1449, 0.35355338
  %v1455 = vmul.f32 %v1452, 0.35355338
  %v1456 = vadd.f32 %v1454, %v154
  %v1457 = vadd.f32 %v1455, %v155
  %v1458 = vsel %vm309, %v1456, -inf
  %1459 = vmax.xlane.f32.xlu0 %v1458
  %v1460 = vpop.xlane.xlu0 %1459
  %v1461 = vsel %vm309, %v1457, -inf
  %1462 = vmax.xlane.f32.xlu0 %v1461
  %v1463 = vpop.xlane.xlu0 %1462
  %v1464 = vsub.f32 %v1456, %v1460
  %v1465 = vsub.f32 %v1457, %v1463
  %v1466 = vmul.f32 %v1464, 1.442695
  %v1467 = vpow.pop %v1466
  %v1468 = vmul.f32 %v1465, 1.442695
  %v1469 = vpow.pop %v1468
  %v1470 = vsel %vm309, %v1467, 0.0
  %1471 = vadd.xlane.f32.xlu0 %v1470
  %v1472 = vpop.xlane.xlu0 %1471
  %v1473 = vsel %vm309, %v1469, 0.0
  %1474 = vadd.xlane.f32.xlu0 %v1473
  %v1475 = vpop.xlane.xlu0 %1474
  %v1476 = vrcp.pop %v1472
  %v1477 = vmul.f32 %v1472, %v1476
  %v1478 = vsub.f32 1.0, %v1477
  %v1479 = vmul.f32 %v1476, %v1478
  %v1480 = vadd.f32 %v1476, %v1479
  %vm1481 = vweird.f32 %v1472
  %vm1482 = vweird.f32 %v1476
  %vm1483 = vmor %vm1481, %vm1482
  %v1484 = vsel %vm1483, %v1476, %v1480
  %v1485 = vand.u32 2147483647, %v1472
  %vm1486 = vcmp.eq.f32.partialorder %v1485, 8.507059e+37
  %v1487 = vand.u32 %v1472, 2147483648
  %v1488 = vor.u32 1.1754944e-38, %v1487
  %v1489 = vsel %vm1486, %v1488, %v1484
  %v1490 = vmul.f32 %v1467, %v1489
  %v1491 = vrcp.pop %v1475
  %v1492 = vmul.f32 %v1475, %v1491
  %v1493 = vsub.f32 1.0, %v1492
  %v1494 = vmul.f32 %v1491, %v1493
  %v1495 = vadd.f32 %v1491, %v1494
  %vm1496 = vweird.f32 %v1475
  %vm1497 = vweird.f32 %v1491
  %vm1498 = vmor %vm1496, %vm1497
  %v1499 = vsel %vm1498, %v1491, %v1495
  %v1500 = vand.u32 2147483647, %v1475
  %vm1501 = vcmp.eq.f32.partialorder %v1500, 8.507059e+37
  %v1502 = vand.u32 %v1475, 2147483648
  %v1503 = vor.u32 1.1754944e-38, %v1502
  %v1504 = vsel %vm1501, %v1503, %v1499
  %v1505 = vmul.f32 %v1469, %v1504
  %v1506 = vmul.f32 %v1068, %v174
  %v1507 = vmul.f32 %v1071, %v174
  %v1509 = vsel %vm309, %v1490, 0
  %v1512 = vsel %vm309, %v1505, 0
  %1514 = vmatpush.msra.mxu0 0.0
  %1515 = vmatpush.msra.mxu0 0.0
  %1516 = vmatpush.msra.mxu0 0.0
  %1517 = vmatpush.msra.mxu0 0.0
  %1518 = vmatpush.msra.mxu0 0.0
  %1519 = vmatpush.msra.mxu0 0.0
  %1520 = vmatpush.msra.mxu0 0.0
  %1521 = vmatpush.msra.mxu0 0.0
  %1522 = vmatpush.msra.mxu0 0.0
  %1523 = vmatpush.msra.mxu0 0.0
  %1524 = vmatpush.msra.mxu0 0.0
  %1525 = vmatpush.msra.mxu0 0.0
  %1526 = vmatpush.msra.mxu0 0.0
  %1527 = vmatpush.msra.mxu0 0.0
  %1528 = vmatpush.msra.mxu0 %v1507
  %1529 = vmatpush.msra.mxu0 %v1506
  %1530 = vmatmul.f32.gmra.mxu0 %v1509
  %v1531 = vpop.f32.mrf.mxu0
  %v1532 = vadd.f32 0.0, %v1531
  %1533 = vmatmul.f32.gmra.mxu0 %v1512
  %v1534 = vpop.f32.mrf.mxu0
  %v1535 = vadd.f32 0.0, %v1534
  %1536 = vdwg.mxu0
  %v1537 = vadd.f32 %v1421, %v1532
  %v1538 = vadd.f32 %v1422, %v1535
  %v1539 = vld [vmem:[%s2 + $0x208] sm:$0xff]
  %v1540 = vld [vmem:[%s2 + $0x210] sm:$0xff]
  %v1541 = vld [vmem:[%s2 + $0x218] sm:$0xff]
  %v1542 = vld [vmem:[%s2 + $0x220] sm:$0xff]
  %v1543 = vld [vmem:[%s2 + $0x240] sm:$0x1]
  %v1544 = vperm.slane %v1543, 0
  %v1546 = vsel %vm75, %v1537, 0
  %v1549 = vsel %vm75, %v1538, 0
  %1551 = vmatpush.msra.mxu0 0.0
  %1552 = vmatpush.msra.mxu0 0.0
  %1553 = vmatpush.msra.mxu0 0.0
  %1554 = vmatpush.msra.mxu0 0.0
  %1555 = vmatpush.msra.mxu0 0.0
  %1556 = vmatpush.msra.mxu0 0.0
  %1557 = vmatpush.msra.mxu0 0.0
  %1558 = vmatpush.msra.mxu0 0.0
  %1559 = vmatpush.msra.mxu0 0.0
  %1560 = vmatpush.msra.mxu0 0.0
  %1561 = vmatpush.msra.mxu0 0.0
  %1562 = vmatpush.msra.mxu0 0.0
  %1563 = vmatpush.msra.mxu0 %v1542
  %1564 = vmatpush.msra.mxu0 %v1541
  %1565 = vmatpush.msra.mxu0 %v1540
  %1566 = vmatpush.msra.mxu0 %v1539
  %1567 = vmatmul.f32.gmra.mxu0 %v1546
  %v1568 = vpop.f32.mrf.mxu0
  %v1569 = vadd.f32 %v1544, %v1568
  %1570 = vmatmul.f32.gmra.mxu0 %v1549
  %v1571 = vpop.f32.mrf.mxu0
  %v1572 = vadd.f32 %v1544, %v1571
  %1573 = vdwg.mxu0
  %v1574 = vadd.f32 %v1569, %v978
  %v1575 = vadd.f32 %v1572, %v979
  %v1576 = vld [vmem:[%s2 + $0x248] sm:$0x1]
  %v1577 = vld [vmem:[%s2 + $0x250] sm:$0x1]
  %v1578 = vsel %vm75, %v1574, 0.0
  %1579 = vadd.xlane.f32.xlu0 %v1578
  %v1580 = vpop.xlane.xlu0 %1579
  %v1581 = vsel %vm75, %v1575, 0.0
  %1582 = vadd.xlane.f32.xlu0 %v1581
  %v1583 = vpop.xlane.xlu0 %1582
  %v1584 = vmul.f32 %v1580, %v88
  %v1585 = vmul.f32 %v1583, %v88
  %v1586 = vmul.f32 %v1574, %v1574
  %v1587 = vmul.f32 %v1575, %v1575
  %v1588 = vsel %vm75, %v1586, 0.0
  %1589 = vadd.xlane.f32.xlu0 %v1588
  %v1590 = vpop.xlane.xlu0 %1589
  %v1591 = vsel %vm75, %v1587, 0.0
  %1592 = vadd.xlane.f32.xlu0 %v1591
  %v1593 = vpop.xlane.xlu0 %1592
  %v1594 = vmul.f32 %v1590, %v88
  %v1595 = vmul.f32 %v1593, %v88
  %v1596 = vmul.f32 %v1584, %v1584
  %v1597 = vmul.f32 %v1585, %v1585
  %v1598 = vsub.f32 %v1594, %v1596
  %v1599 = vsub.f32 %v1595, %v1597
  %v1600 = vsub.f32 %v1574, %v1584
  %v1601 = vsub.f32 %v1575, %v1585
  %v1602 = vadd.f32 %v1598, 1e-12
  %v1603 = vadd.f32 %v1599, 1e-12
  %v1604 = vrsqrt.pop %v1602
  %v1605 = vmul.f32 %v1604, %v1602
  %v1606 = vmul.f32 %v1605, %v1604
  %v1607 = vmul.f32 0.5, %v1606
  %v1608 = vsub.f32 1.5, %v1607
  %v1609 = vmul.f32 %v1604, %v1608
  %vm1610 = vweird.f32 %v1602
  %vm1611 = vweird.f32 %v1604
  %vm1612 = vmor %vm1610, %vm1611
  %v1613 = vsel %vm1612, %v1604, %v1609
  %v1614 = vrsqrt.pop %v1603
  %v1615 = vmul.f32 %v1614, %v1603
  %v1616 = vmul.f32 %v1615, %v1614
  %v1617 = vmul.f32 0.5, %v1616
  %v1618 = vsub.f32 1.5, %v1617
  %v1619 = vmul.f32 %v1614, %v1618
  %vm1620 = vweird.f32 %v1603
  %vm1621 = vweird.f32 %v1614
  %vm1622 = vmor %vm1620, %vm1621
  %v1623 = vsel %vm1622, %v1614, %v1619
  %v1624 = vmul.f32 %v1600, %v1613
  %v1625 = vmul.f32 %v1601, %v1623
  %v1626 = vperm.slane %v1576, 0
  %v1627 = vmul.f32 %v1624, %v1626
  %v1628 = vmul.f32 %v1625, %v1626
  %v1629 = vperm.slane %v1577, 0
  %v1630 = vadd.f32 %v1627, %v1629
  %v1631 = vadd.f32 %v1628, %v1629
  %v1632 = vld [vmem:[%s3 + $0x28] sm:$0xff]
  %v1633 = vld [vmem:[%s3 + $0x30] sm:$0xff]
  %v1634 = vld [vmem:[%s3 + $0x38] sm:$0xff]
  %v1635 = vld [vmem:[%s3 + $0x40] sm:$0xff]
  %v1636 = vld [vmem:[%s3 + $0x48] sm:$0x1]
  %v1637 = vperm.slane %v1636, 0
  %v1639 = vsel %vm75, %v1630, 0
  %v1642 = vsel %vm75, %v1631, 0
  %1644 = vmatpush.msra.mxu0 0.0
  %1645 = vmatpush.msra.mxu0 0.0
  %1646 = vmatpush.msra.mxu0 0.0
  %1647 = vmatpush.msra.mxu0 0.0
  %1648 = vmatpush.msra.mxu0 0.0
  %1649 = vmatpush.msra.mxu0 0.0
  %1650 = vmatpush.msra.mxu0 0.0
  %1651 = vmatpush.msra.mxu0 0.0
  %1652 = vmatpush.msra.mxu0 0.0
  %1653 = vmatpush.msra.mxu0 0.0
  %1654 = vmatpush.msra.mxu0 0.0
  %1655 = vmatpush.msra.mxu0 0.0
  %1656 = vmatpush.msra.mxu0 %v1635
  %1657 = vmatpush.msra.mxu0 %v1634
  %1658 = vmatpush.msra.mxu0 %v1633
  %1659 = vmatpush.msra.mxu0 %v1632
  %1660 = vmatmul.f32.gmra.mxu0 %v1639
  %v1661 = vpop.f32.mrf.mxu0
  %v1662 = vadd.f32 %v1637, %v1661
  %1663 = vmatmul.f32.gmra.mxu0 %v1642
  %v1664 = vpop.f32.mrf.mxu0
  %v1665 = vadd.f32 %v1637, %v1664
  %1666 = vdwg.mxu0
  %v1667 = vmul.f32 %v1662, %v1662
  %v1668 = vmul.f32 %v1665, %v1665
  %v1669 = vmul.f32 %v1662, %v1667
  %v1670 = vmul.f32 %v1665, %v1668
  %v1671 = vmul.f32 %v1669, 0.044715
  %v1672 = vmul.f32 %v1670, 0.044715
  %v1673 = vadd.f32 %v1662, %v1671
  %v1674 = vadd.f32 %v1665, %v1672
  %v1675 = vmul.f32 %v1673, 0.7978846
  %v1676 = vmul.f32 %v1674, 0.7978846
  %v1677 = vtanh.pop %v1675
  %v1678 = vtanh.pop %v1676
  %v1679 = vadd.f32 %v1677, 1.0
  %v1680 = vadd.f32 %v1678, 1.0
  %v1681 = vmul.f32 %v1679, 0.5
  %v1682 = vmul.f32 %v1680, 0.5
  %v1683 = vmul.f32 %v1662, %v1681
  %v1684 = vmul.f32 %v1665, %v1682
  %v1685 = vld [vmem:[%s2 + $0x258] sm:$0xff]
  %v1686 = vld [vmem:[%s2 + $0x260] sm:$0xff]
  %v1687 = vld [vmem:[%s2 + $0x268] sm:$0xff]
  %v1688 = vld [vmem:[%s2 + $0x270] sm:$0xff]
  %v1689 = vld [vmem:[%s2 + $0x278] sm:$0xff]
  %v1690 = vld [vmem:[%s2 + $0x280] sm:$0xff]
  %v1691 = vld [vmem:[%s2 + $0x288] sm:$0xff]
  %v1692 = vld [vmem:[%s2 + $0x290] sm:$0xff]
  %v1693 = vld [vmem:[%s2 + $0x298] sm:$0xff]
  %v1694 = vld [vmem:[%s2 + $0x2a0] sm:$0xff]
  %v1695 = vld [vmem:[%s2 + $0x2a8] sm:$0xff]
  %v1696 = vld [vmem:[%s2 + $0x2b0] sm:$0xff]
  %v1697 = vld [vmem:[%s2 + $0x2b8] sm:$0xff]
  %v1698 = vld [vmem:[%s2 + $0x2c0] sm:$0xff]
  %v1699 = vld [vmem:[%s2 + $0x2c8] sm:$0xff]
  %v1700 = vld [vmem:[%s2 + $0x2d0] sm:$0xff]
  %v1701 = vld [vmem:[%s2 + $0x2d8] sm:$0x1]
  %v1702 = vperm.slane %v1701, 0
  %1703 = vmatpush.msra.mxu0 %v1700
  %1704 = vmatpush.msra.mxu0 %v1699
  %1705 = vmatpush.msra.mxu0 %v1698
  %1706 = vmatpush.msra.mxu0 %v1697
  %1707 = vmatpush.msra.mxu0 %v1696
  %1708 = vmatpush.msra.mxu0 %v1695
  %1709 = vmatpush.msra.mxu0 %v1694
  %1710 = vmatpush.msra.mxu0 %v1693
  %1711 = vmatpush.msra.mxu0 %v1692
  %1712 = vmatpush.msra.mxu0 %v1691
  %1713 = vmatpush.msra.mxu0 %v1690
  %1714 = vmatpush.msra.mxu0 %v1689
  %1715 = vmatpush.msra.mxu0 %v1688
  %1716 = vmatpush.msra.mxu0 %v1687
  %1717 = vmatpush.msra.mxu0 %v1686
  %1718 = vmatpush.msra.mxu0 %v1685
  %1719 = vmatmul.f32.gmra.mxu0 %v1683
  %v1720 = vpop.f32.mrf.mxu0
  %v1721 = vadd.f32 %v1702, %v1720
  %1722 = vmatmul.f32.gmra.mxu0 %v1684
  %v1723 = vpop.f32.mrf.mxu0
  %v1724 = vadd.f32 %v1702, %v1723
  %1725 = vdwg.mxu0
  %v1726 = vadd.f32 %v1721, %v1630
  %v1727 = vadd.f32 %v1724, %v1631
  %v1728 = vld [vmem:[%s2 + $0x2e0] sm:$0x1]
  %v1729 = vld [vmem:[%s2 + $0x2e8] sm:$0x1]
  %v1730 = vsel %vm75, %v1726, 0.0
  %1731 = vadd.xlane.f32.xlu0 %v1730
  %v1732 = vpop.xlane.xlu0 %1731
  %v1733 = vsel %vm75, %v1727, 0.0
  %1734 = vadd.xlane.f32.xlu0 %v1733
  %v1735 = vpop.xlane.xlu0 %1734
  %v1736 = vmul.f32 %v1732, %v88
  %v1737 = vmul.f32 %v1735, %v88
  %v1738 = vmul.f32 %v1726, %v1726
  %v1739 = vmul.f32 %v1727, %v1727
  %v1740 = vsel %vm75, %v1738, 0.0
  %1741 = vadd.xlane.f32.xlu0 %v1740
  %v1742 = vpop.xlane.xlu0 %1741
  %v1743 = vsel %vm75, %v1739, 0.0
  %1744 = vadd.xlane.f32.xlu0 %v1743
  %v1745 = vpop.xlane.xlu0 %1744
  %v1746 = vmul.f32 %v1742, %v88
  %v1747 = vmul.f32 %v1745, %v88
  %v1748 = vmul.f32 %v1736, %v1736
  %v1749 = vmul.f32 %v1737, %v1737
  %v1750 = vsub.f32 %v1746, %v1748
  %v1751 = vsub.f32 %v1747, %v1749
  %v1752 = vsub.f32 %v1726, %v1736
  %v1753 = vsub.f32 %v1727, %v1737
  %v1754 = vadd.f32 %v1750, 1e-12
  %v1755 = vadd.f32 %v1751, 1e-12
  %v1756 = vrsqrt.pop %v1754
  %v1757 = vmul.f32 %v1756, %v1754
  %v1758 = vmul.f32 %v1757, %v1756
  %v1759 = vmul.f32 0.5, %v1758
  %v1760 = vsub.f32 1.5, %v1759
  %v1761 = vmul.f32 %v1756, %v1760
  %vm1762 = vweird.f32 %v1754
  %vm1763 = vweird.f32 %v1756
  %vm1764 = vmor %vm1762, %vm1763
  %v1765 = vsel %vm1764, %v1756, %v1761
  %v1766 = vrsqrt.pop %v1755
  %v1767 = vmul.f32 %v1766, %v1755
  %v1768 = vmul.f32 %v1767, %v1766
  %v1769 = vmul.f32 0.5, %v1768
  %v1770 = vsub.f32 1.5, %v1769
  %v1771 = vmul.f32 %v1766, %v1770
  %vm1772 = vweird.f32 %v1755
  %vm1773 = vweird.f32 %v1766
  %vm1774 = vmor %vm1772, %vm1773
  %v1775 = vsel %vm1774, %v1766, %v1771
  %v1776 = vmul.f32 %v1752, %v1765
  %v1777 = vmul.f32 %v1753, %v1775
  %v1778 = vperm.slane %v1728, 0
  %v1779 = vmul.f32 %v1776, %v1778
  %v1780 = vmul.f32 %v1777, %v1778
  %v1781 = vperm.slane %v1729, 0
  %v1782 = vadd.f32 %v1779, %v1781
  %v1783 = vadd.f32 %v1780, %v1781
  %v1784 = vmul.u32 %v138, 8
  %vm1785 = vcmp.eq.s32.totalorder %v20, %v1784
  %v1786 = vsel %vm1785, 1, 0
  %v1787 = vcvt.s32.f32 %v1786
  %v1789 = vsel %vm309, %v1787, 0
  %1791 = vmatpush.msra.mxu0 0.0
  %1792 = vmatpush.msra.mxu0 0.0
  %1793 = vmatpush.msra.mxu0 0.0
  %1794 = vmatpush.msra.mxu0 0.0
  %1795 = vmatpush.msra.mxu0 0.0
  %1796 = vmatpush.msra.mxu0 0.0
  %1797 = vmatpush.msra.mxu0 0.0
  %1798 = vmatpush.msra.mxu0 0.0
  %1799 = vmatpush.msra.mxu0 0.0
  %1800 = vmatpush.msra.mxu0 0.0
  %1801 = vmatpush.msra.mxu0 0.0
  %1802 = vmatpush.msra.mxu0 0.0
  %1803 = vmatpush.msra.mxu0 0.0
  %1804 = vmatpush.msra.mxu0 0.0
  %1805 = vmatpush.msra.mxu0 %v1783
  %1806 = vmatpush.msra.mxu0 %v1782
  %1807 = vmatmul.f32.gmra.mxu0 %v1789
  %v1808 = vpop.f32.mrf.mxu0
  %v1809 = vadd.f32 0.0, %v1808
  %1810 = vdwg.mxu0
  %v1811 = vld [vmem:[%s3 + $0x50] sm:$0xff]
  %v1812 = vld [vmem:[%s3 + $0x58] sm:$0xff]
  %v1813 = vld [vmem:[%s3 + $0x60] sm:$0xff]
  %v1814 = vld [vmem:[%s3 + $0x68] sm:$0xff]
  %v1815 = vld [vmem:[%s3 + $0x70] sm:$0x1]
  %v1816 = vperm.slane %v1815, 0
  %v1818 = vsel %vm75, %v1809, 0
  %1820 = vmatpush.msra.mxu0 0.0
  %1821 = vmatpush.msra.mxu0 0.0
  %1822 = vmatpush.msra.mxu0 0.0
  %1823 = vmatpush.msra.mxu0 0.0
  %1824 = vmatpush.msra.mxu0 0.0
  %1825 = vmatpush.msra.mxu0 0.0
  %1826 = vmatpush.msra.mxu0 0.0
  %1827 = vmatpush.msra.mxu0 0.0
  %1828 = vmatpush.msra.mxu0 0.0
  %1829 = vmatpush.msra.mxu0 0.0
  %1830 = vmatpush.msra.mxu0 0.0
  %1831 = vmatpush.msra.mxu0 0.0
  %1832 = vmatpush.msra.mxu0 %v1814
  %1833 = vmatpush.msra.mxu0 %v1813
  %1834 = vmatpush.msra.mxu0 %v1812
  %1835 = vmatpush.msra.mxu0 %v1811
  %1836 = vmatmul.f32.gmra.mxu0 %v1818
  %v1837 = vpop.f32.mrf.mxu0
  %v1838 = vadd.f32 %v1816, %v1837
  %1839 = vdwg.mxu0
  %1840 = vst [vmem:[%s4] sm:$0x3] %v1838
  // Predicated region
  $region18: #{forward.1} parent=0 // pred_check
    _
  $region19: #{forward.1} parent=0 // pred_check_branch
    %1842 = sbr.rel (0) target = $region21
  $region20: #{forward.1} parent=0 // pred_region
    _
  $region21: #{forward.1} parent=0 // pred_fallthru
    _
  // Predicated region
  $region22: #{forward.1} parent=0 // pred_check
    _
  $region23: #{forward.1} parent=0 // pred_check_branch
    %1844 = sbr.rel (0) target = $region25
  $region24: #{forward.1} parent=0 // pred_region
    _
  $region25: #{forward.1} parent=0 // pred_fallthru
    _

</llo_original>
